<compile_context>
chip_gen: v7x
topology: tpu7x:2x2x1
jax: 0.10.0
libtpu: 0.0.40
codegen_flags: <defaults>
</compile_context>

<pallas_src>
from functools import partial

import jax
import jax.numpy as jnp
from jax.experimental import pallas as pl
from jax.experimental.pallas import tpu as pltpu


def _round_up(x, m):
    return ((x + m - 1) // m) * m


def weight_norm_weight(v, g):
    # PyTorch weight_norm default dim=0: per-output-channel norm over (in, k).
    norm = jnp.sqrt(jnp.sum(v * v, axis=(1, 2), keepdims=True))
    return (g[:, None, None] / norm) * v


# --------------------------------------------------------------------------- #
# Fused kernel: all TemporalBlocks (causal dilated conv -> ReLU -> causal
# dilated conv -> ReLU -> (+ residual) -> ReLU) plus the linear head, one
# (batch, time-tile) per grid step.  Per-layer causal history lives in tiny
# VMEM scratch carried across time tiles.
# --------------------------------------------------------------------------- #
def _tcn_fused_kernel(*refs, K, dilations, has_ds):
    n_layers = len(dilations)

    # ---- unpack refs: inputs, output, scratch ------------------------------
    idx = 0
    x_ref = refs[idx]; idx += 1
    layer_refs = []
    for l in range(n_layers):
        if has_ds[l]:
            layer_refs.append(tuple(refs[idx:idx + 6])); idx += 6          # w1,b1,w2,b2,wd,bd
        else:
            layer_refs.append(tuple(refs[idx:idx + 4]) + (None, None)); idx += 4
    lin_w_ref = refs[idx]; lin_b_ref = refs[idx + 1]; idx += 2
    o_ref = refs[idx]; idx += 1
    hist_refs = refs[idx:idx + 2 * n_layers]          # per layer: (hist_x, hist_h)

    t = pl.program_id(1)
    tile_t = o_ref.shape[2]

    # Fresh sequence (new batch element): the causal left halos are all zeros.
    @pl.when(t == 0)
    def _():
        for h_ref in hist_refs:
            h_ref[...] = jnp.zeros_like(h_ref)

    def dilated_stack(cur, hist, d, pad):
        # Taps of the causal dilated conv WITHOUT materializing [hist | cur]:
        # tap k < K-1 is a two-piece concat, tap K-1 is `cur` itself (no copy).
        taps = []
        for k in range(K - 1):
            shift = pad - k * d                        # static, > 0
            pieces = [hist[:, k * d:]]
            if tile_t - shift > 0:
                pieces.append(cur[:, :tile_t - shift])
            taps.append(pieces[0] if len(pieces) == 1
                        else jnp.concatenate(pieces, axis=1))
        taps.append(cur)
        return jnp.concatenate(taps, axis=0)           # (K*C, tile_t)

    y = x_ref[0]                                       # (C0, tile_t), compute dtype
    for l in range(n_layers):
        w1, b1, w2, b2, wd, bd = layer_refs[l]
        histx = hist_refs[2 * l]
        histh = hist_refs[2 * l + 1]
        d = dilations[l]
        pad = (K - 1) * d
        x_in = y

        # conv1 -> relu  (dropout1 = identity in eval mode); K taps in one matmul
        h = jnp.dot(w1[...], dilated_stack(x_in, histx[...], d, pad),
                    preferred_element_type=jnp.float32)
        h = jnp.maximum(h + b1[...], 0.0).astype(x_in.dtype)

        # conv2 -> relu  (dropout2 = identity)
        h2 = jnp.dot(w2[...], dilated_stack(h, histh[...], d, pad),
                     preferred_element_type=jnp.float32)
        h2 = jnp.maximum(h2 + b2[...], 0.0)

        # residual: identity when C_in == C_out (PyTorch downsample=None)
        if wd is not None:
            res = jnp.dot(wd[...], x_in, preferred_element_type=jnp.float32) + bd[...]
        else:
            res = x_in.astype(jnp.float32)

        # carry the causal history (last `pad` columns) to the next time tile
        histx[...] = x_in[:, tile_t - pad:]
        histh[...] = h[:, tile_t - pad:]

        y = jnp.maximum(h2 + res, 0.0).astype(x_in.dtype)

    # fused linear head: consumes the last activation directly (no HBM round trip)
    out = jnp.dot(lin_w_ref[...], y, preferred_element_type=jnp.float32) + lin_b_ref[...]
    o_ref[0] = out.astype(o_ref.dtype)


# --------------------------------------------------------------------------- #
# Full TCN forward (default "no sequence_lens" path of the PyTorch module).
# --------------------------------------------------------------------------- #
def tcn_forward(x, params, *, kernel_size, eff_hist, tile_t_cap=1024,
                compute_dtype=jnp.float32, vmem_limit_bytes=48 * 1024 * 1024):
    """x: (B, input_size, T) -> (B*(T-eff_hist), output_size).

    tile_t_cap: time-tile size; floored to a multiple of 128.  1024 default works on
      all chips at moderate channel counts; raise on v5e/v6e (128 MiB VMEM), keep
      <= 1024 and prefer compute_dtype=bf16 on v7x (64 MiB VMEM).
    compute_dtype: jnp.bfloat16 in production (f32 accumulation is kept).
    """
    B, C0, T = x.shape
    K = kernel_size
    n_layers = len(params["blocks"])
    dilations = tuple(2 ** i for i in range(n_layers))
    max_pad = (K - 1) * dilations[-1]
    assert K >= 2 and T > eff_hist

    # Lane-dense time tiles: multiple of 128, and at least the deepest causal halo.
    tile_t_cap = max(128, (tile_t_cap // 128) * 128)
    tile_t = min(tile_t_cap, _round_up(T, 128))
    tile_t = max(tile_t, _round_up(max_pad, 128))
    T_pad = _round_up(T, tile_t)

    # Right-pad time once; causal convs never let the pad contaminate valid outputs,
    # and the pad (plus the eff_hist warm-up) is sliced off the small head output.
    x_pad = jnp.pad(x, ((0, 0), (0, 0), (0, T_pad - T))).astype(compute_dtype)

    const2 = lambda b, t: (0, 0)
    in_specs = [pl.BlockSpec((1, C0, tile_t), lambda b, t: (b, 0, t))]
    args = [x_pad]
    scratch_shapes = []
    has_ds = []

    c_in = C0
    for l, bp in enumerate(params["blocks"]):
        c_out = bp["w1"].shape[0]
        d = dilations[l]
        pad = (K - 1) * d

        # weight-norm + tap-fused flattening (cheap wrapper glue on tiny weights)
        w1 = weight_norm_weight(bp["w1"], bp["g1"])          # (c_out, c_in, K)
        w2 = weight_norm_weight(bp["w2"], bp["g2"])          # (c_out, c_out, K)
        w1_flat = jnp.transpose(w1, (0, 2, 1)).reshape(c_out, K * c_in).astype(compute_dtype)
        w2_flat = jnp.transpose(w2, (0, 2, 1)).reshape(c_out, K * c_out).astype(compute_dtype)
        b1 = bp["b1"].reshape(c_out, 1).astype(jnp.float32)
        b2 = bp["b2"].reshape(c_out, 1).astype(jnp.float32)

        in_specs += [pl.BlockSpec((c_out, K * c_in), const2),
                     pl.BlockSpec((c_out, 1), const2),
                     pl.BlockSpec((c_out, K * c_out), const2),
                     pl.BlockSpec((c_out, 1), const2)]
        args += [w1_flat, b1, w2_flat, b2]

        ds = "wd" in bp                                      # only when c_in != c_out
        has_ds.append(ds)
        if ds:
            in_specs += [pl.BlockSpec((c_out, c_in), const2),
                         pl.BlockSpec((c_out, 1), const2)]
            args += [bp["wd"].astype(compute_dtype),
                     bp["bd"].reshape(c_out, 1).astype(jnp.float32)]

        # Tiny per-layer causal history carries (conv1 input + conv2 input).
        scratch_shapes += [pltpu.VMEM((c_in, pad), compute_dtype),
                           pltpu.VMEM((c_out, pad), compute_dtype)]
        c_in = c_out

    O = params["lin_w"].shape[0]
    in_specs += [pl.BlockSpec((O, c_in), const2),
                 pl.BlockSpec((O, 1), const2)]
    args += [params["lin_w"].astype(compute_dtype),
             params["lin_b"].reshape(O, 1).astype(jnp.float32)]

    kern = partial(_tcn_fused_kernel, K=K, dilations=dilations, has_ds=tuple(has_ds))

    out = pl.pallas_call(
        kern,
        out_shape=jax.ShapeDtypeStruct((B, O, T_pad), jnp.float32),
        grid_spec=pltpu.PrefetchScalarGridSpec(
            num_scalar_prefetch=0,
            grid=(B, T_pad // tile_t),
            in_specs=in_specs,
            out_specs=pl.BlockSpec((1, O, tile_t), lambda b, t: (b, 0, t)),
            scratch_shapes=scratch_shapes,
        ),
        compiler_params=pltpu.CompilerParams(
            # batch: independent (megacore-shardable on v7x); time: carries state.
            dimension_semantics=("parallel", "arbitrary"),
            vmem_limit_bytes=vmem_limit_bytes,
        ),
    )(*args)

    # (B, O, T_pad) -> drop warm-up + pad, transpose, flatten (matches torch
    # cat([y1[i,:,eff_hist:]], dim=1).transpose(0,1) followed by nn.Linear output).
    y = out[:, :, eff_hist:T]
    return jnp.transpose(y, (0, 2, 1)).reshape(B * (T - eff_hist), O)


# --------------------------------------------------------------------------- #
# Parameter construction (mirrors init_weights + weight_norm defaults).
# --------------------------------------------------------------------------- #
def make_params(key, input_size, output_size, num_channels, kernel_size):
    blocks = []
    c_in = input_size
    for c_out in num_channels:
        key, k1, k2, k3, k4, k5, k6 = jax.random.split(key, 7)
        p = {
            "w1": 0.01 * jax.random.normal(k1, (c_out, c_in, kernel_size), jnp.float32),
            "b1": 0.01 * jax.random.normal(k2, (c_out,), jnp.float32),
            "w2": 0.01 * jax.random.normal(k3, (c_out, c_out, kernel_size), jnp.float32),
            "b2": 0.01 * jax.random.normal(k4, (c_out,), jnp.float32),
        }
        # weight_norm init: g = ||v||  => effective weight == v
        p["g1"] = jnp.sqrt(jnp.sum(p["w1"] ** 2, axis=(1, 2)))
        p["g2"] = jnp.sqrt(jnp.sum(p["w2"] ** 2, axis=(1, 2)))
        if c_in != c_out:       # PyTorch: downsample only when channel counts differ
            p["wd"] = 0.01 * jax.random.normal(k5, (c_out, c_in), jnp.float32)
            p["bd"] = 0.01 * jax.random.normal(k6, (c_out,), jnp.float32)
        blocks.append(p)
        c_in = c_out
    key, kw, kb = jax.random.split(key, 3)
    return {
        "blocks": blocks,
        "lin_w": 0.01 * jax.random.normal(kw, (output_size, num_channels[-1]), jnp.float32),
        "lin_b": 0.01 * jax.random.normal(kb, (output_size,), jnp.float32),
    }


# --------------------------------------------------------------------------- #
# Pure-JAX reference mirroring the PyTorch TCN (eval mode, no sequence_lens).
# --------------------------------------------------------------------------- #
def reference_forward(x, params, *, kernel_size, eff_hist):
    T = x.shape[2]

    def conv1d(inp, w, b, dil, p):
        y = jax.lax.conv_general_dilated(
            inp, w, window_strides=(1,), padding=[(p, p)],
            rhs_dilation=(dil,), dimension_numbers=("NCH", "OIH", "NCH"))
        return y + b[None, :, None]

    y = x
    for i, bp in enumerate(params["blocks"]):
        dil = 2 ** i
        p = (kernel_size - 1) * dil
        w1 = weight_norm_weight(bp["w1"], bp["g1"])
        w2 = weight_norm_weight(bp["w2"], bp["g2"])
        h = jnp.maximum(conv1d(y, w1, bp["b1"], dil, p)[:, :, :T], 0.0)
        h2 = jnp.maximum(conv1d(h, w2, bp["b2"], dil, p)[:, :, :T], 0.0)
        res = conv1d(y, bp["wd"][:, :, None], bp["bd"], 1, 0) if "wd" in bp else y
        y = jnp.maximum(h2 + res, 0.0)
    y = y[:, :, eff_hist:]
    B, C, Tt = y.shape
    y = jnp.transpose(y, (0, 2, 1)).reshape(B * Tt, C)
    return y @ params["lin_w"].T + params["lin_b"]


if __name__ == "__main__":
    # TCN(input_size=4, output_size=5, num_channels=[8, 8], ksize=3, dropout=0.2,
    #     eff_hist = receptive field - 1 = (3-1)*(2^2-1) = 6).
    # Block 0: 4->8 (learned 1x1 residual); block 1: 8->8 (identity residual).
    B, input_size, output_size, T = 2, 4, 5, 16
    num_channels = [8, 8]
    kernel_size = 3
    eff_hist = (kernel_size - 1) * (2 ** len(num_channels) - 1)   # 6

    key = jax.random.PRNGKey(0)
    kx, kx2, kp = jax.random.split(key, 3)
    x = jax.random.normal(kx, (B, input_size, T), jnp.float32)
    params = make_params(kp, input_size, output_size, num_channels, kernel_size)

    # Single time tile, f32.
    out = jax.block_until_ready(
        tcn_forward(x, params, kernel_size=kernel_size, eff_hist=eff_hist))
    ref = reference_forward(x, params, kernel_size=kernel_size, eff_hist=eff_hist)
    assert out.shape == (B * (T - eff_hist), output_size)
    assert jnp.allclose(out, ref, atol=1e-5, rtol=1e-4), "mismatch vs reference (T=16)"

    # Longer sequence, several time tiles: exercises the cross-tile causal history
    # carry (tile_t = 128 -> 3 time tiles for T = 300), f32.
    T2 = 300
    x2 = jax.random.normal(kx2, (B, input_size, T2), jnp.float32)
    out2 = jax.block_until_ready(
        tcn_forward(x2, params, kernel_size=kernel_size, eff_hist=eff_hist,
                    tile_t_cap=128))
    ref2 = reference_forward(x2, params, kernel_size=kernel_size, eff_hist=eff_hist)
    assert out2.shape == (B * (T2 - eff_hist), output_size)
    assert jnp.allclose(out2, ref2, atol=1e-5, rtol=1e-4), "mismatch vs reference (T=300)"

    # Production bf16 path smoke test (loose tolerance vs the f32 reference).
    out_bf16 = jax.block_until_ready(
        tcn_forward(x2, params, kernel_size=kernel_size, eff_hist=eff_hist,
                    tile_t_cap=128, compute_dtype=jnp.bfloat16))
    assert out_bf16.shape == (B * (T2 - eff_hist), output_size)
    assert jnp.allclose(out_bf16, ref2, atol=5e-3, rtol=5e-2), "bf16 path diverged"

    # TODO(synk): the ragged `sequence_lens` gather path of TCN.forward is not
    # implemented; only the default full-length path is.
    print("KERNEL_OK")
</pallas_src>

<mosaic_0001>
module attributes {stable_mosaic.version = 11 : i64} {
  func.func @_tcn_fused_kernel(%arg0: i32, %arg1: i32, %arg2: memref<1x4x128xf32, #tpu.memory_space<vmem>>, %arg3: memref<8x12xf32, #tpu.memory_space<vmem>>, %arg4: memref<8x1xf32, #tpu.memory_space<vmem>>, %arg5: memref<8x24xf32, #tpu.memory_space<vmem>>, %arg6: memref<8x1xf32, #tpu.memory_space<vmem>>, %arg7: memref<8x4xf32, #tpu.memory_space<vmem>>, %arg8: memref<8x1xf32, #tpu.memory_space<vmem>>, %arg9: memref<8x24xf32, #tpu.memory_space<vmem>>, %arg10: memref<8x1xf32, #tpu.memory_space<vmem>>, %arg11: memref<8x24xf32, #tpu.memory_space<vmem>>, %arg12: memref<8x1xf32, #tpu.memory_space<vmem>>, %arg13: memref<5x8xf32, #tpu.memory_space<vmem>>, %arg14: memref<5x1xf32, #tpu.memory_space<vmem>>, %arg15: memref<1x5x128xf32, #tpu.memory_space<vmem>>, %arg16: memref<4x2xf32, #tpu.memory_space<vmem>>, %arg17: memref<8x2xf32, #tpu.memory_space<vmem>>, %arg18: memref<8x4xf32, #tpu.memory_space<vmem>>, %arg19: memref<8x4xf32, #tpu.memory_space<vmem>>) attributes {dimension_semantics = [#tpu.dimension_semantics<parallel>, #tpu.dimension_semantics<arbitrary>], iteration_bounds = array<i64: 2, 1>, scalar_prefetch = 0 : i64, scratch_operands = 4 : i64, tpu.core_type = #tpu.core_type<tc>, window_params = [{transform_indices = @transform_0, window_bounds = array<i64: 1, 4, 128>}, {pipeline_mode = #tpu.pipeline_mode<synchronous>, transform_indices = @transform_1, window_bounds = array<i64: 8, 12>}, {pipeline_mode = #tpu.pipeline_mode<synchronous>, transform_indices = @transform_2, window_bounds = array<i64: 8, 1>}, {pipeline_mode = #tpu.pipeline_mode<synchronous>, transform_indices = @transform_3, window_bounds = array<i64: 8, 24>}, {pipeline_mode = #tpu.pipeline_mode<synchronous>, transform_indices = @transform_4, window_bounds = array<i64: 8, 1>}, {pipeline_mode = #tpu.pipeline_mode<synchronous>, transform_indices = @transform_5, window_bounds = array<i64: 8, 4>}, {pipeline_mode = #tpu.pipeline_mode<synchronous>, transform_indices = @transform_6, window_bounds = array<i64: 8, 1>}, {pipeline_mode = #tpu.pipeline_mode<synchronous>, transform_indices = @transform_7, window_bounds = array<i64: 8, 24>}, {pipeline_mode = #tpu.pipeline_mode<synchronous>, transform_indices = @transform_8, window_bounds = array<i64: 8, 1>}, {pipeline_mode = #tpu.pipeline_mode<synchronous>, transform_indices = @transform_9, window_bounds = array<i64: 8, 24>}, {pipeline_mode = #tpu.pipeline_mode<synchronous>, transform_indices = @transform_10, window_bounds = array<i64: 8, 1>}, {pipeline_mode = #tpu.pipeline_mode<synchronous>, transform_indices = @transform_11, window_bounds = array<i64: 5, 8>}, {pipeline_mode = #tpu.pipeline_mode<synchronous>, transform_indices = @transform_12, window_bounds = array<i64: 5, 1>}, {transform_indices = @transform_13, window_bounds = array<i64: 1, 5, 128>}]} {
    %c0_i32 = arith.constant 0 : i32
    %0 = arith.cmpi eq, %arg1, %c0_i32 : i32
    %1 = arith.extui %0 : i1 to i32
    %c0_i32_0 = arith.constant 0 : i32
    %2 = arith.cmpi ne, %1, %c0_i32_0 : i32
    scf.if %2 {
      %cst_57 = arith.constant 0.000000e+00 : f32
      %88 = vector.broadcast %cst_57 : f32 to vector<4x2xf32>
      %c0_58 = arith.constant 0 : index
      %c0_59 = arith.constant 0 : index
      %89 = vector.load %arg16[%c0_58, %c0_59] : memref<4x2xf32, #tpu.memory_space<vmem>>, vector<4x2xf32>
      tpu.vector_store %arg16[%c0_58, %c0_59], %88 {strides = array<i32>} : memref<4x2xf32, #tpu.memory_space<vmem>>, vector<4x2xf32>,
      %cst_60 = arith.constant 0.000000e+00 : f32
      %90 = vector.broadcast %cst_60 : f32 to vector<8x2xf32>
      %c0_61 = arith.constant 0 : index
      %c0_62 = arith.constant 0 : index
      %91 = vector.load %arg17[%c0_61, %c0_62] : memref<8x2xf32, #tpu.memory_space<vmem>>, vector<8x2xf32>
      tpu.vector_store %arg17[%c0_61, %c0_62], %90 {strides = array<i32>} : memref<8x2xf32, #tpu.memory_space<vmem>>, vector<8x2xf32>,
      %cst_63 = arith.constant 0.000000e+00 : f32
      %92 = vector.broadcast %cst_63 : f32 to vector<8x4xf32>
      %c0_64 = arith.constant 0 : index
      %c0_65 = arith.constant 0 : index
      %93 = vector.load %arg18[%c0_64, %c0_65] : memref<8x4xf32, #tpu.memory_space<vmem>>, vector<8x4xf32>
      tpu.vector_store %arg18[%c0_64, %c0_65], %92 {strides = array<i32>} : memref<8x4xf32, #tpu.memory_space<vmem>>, vector<8x4xf32>,
      %cst_66 = arith.constant 0.000000e+00 : f32
      %94 = vector.broadcast %cst_66 : f32 to vector<8x4xf32>
      %c0_67 = arith.constant 0 : index
      %c0_68 = arith.constant 0 : index
      %95 = vector.load %arg19[%c0_67, %c0_68] : memref<8x4xf32, #tpu.memory_space<vmem>>, vector<8x4xf32>
      tpu.vector_store %arg19[%c0_67, %c0_68], %94 {strides = array<i32>} : memref<8x4xf32, #tpu.memory_space<vmem>>, vector<8x4xf32>,
    } else {
    }
    %c0 = arith.constant 0 : index
    %c0_1 = arith.constant 0 : index
    %c0_2 = arith.constant 0 : index
    %3 = vector.load %arg2[%c0, %c0_1, %c0_2] : memref<1x4x128xf32, #tpu.memory_space<vmem>>, vector<1x4x128xf32>
    %4 = vector.shape_cast %3 : vector<1x4x128xf32> to vector<4x128xf32>
    %c0_3 = arith.constant 0 : index
    %c0_4 = arith.constant 0 : index
    %5 = vector.load %arg3[%c0_3, %c0_4] : memref<8x12xf32, #tpu.memory_space<vmem>>, vector<8x12xf32>
    %c0_5 = arith.constant 0 : index
    %c0_6 = arith.constant 0 : index
    %6 = vector.load %arg16[%c0_5, %c0_6] : memref<4x2xf32, #tpu.memory_space<vmem>>, vector<4x2xf32>
    %7 = vector.extract_strided_slice %4 {offsets = [0, 0], sizes = [4, 126], strides = [1, 1]} : vector<4x128xf32> to vector<4x126xf32>
    %8 = tpu.concatenate %6, %7 in 1 : vector<4x2xf32>, vector<4x126xf32> -> vector<4x128xf32>
    %9 = vector.extract_strided_slice %6 {offsets = [0, 1], sizes = [4, 1], strides = [1, 1]} : vector<4x2xf32> to vector<4x1xf32>
    %10 = vector.extract_strided_slice %4 {offsets = [0, 0], sizes = [4, 127], strides = [1, 1]} : vector<4x128xf32> to vector<4x127xf32>
    %11 = tpu.concatenate %9, %10 in 1 : vector<4x1xf32>, vector<4x127xf32> -> vector<4x128xf32>
    %12 = tpu.concatenate %8, %11, %4 in 0 : vector<4x128xf32>, vector<4x128xf32>, vector<4x128xf32> -> vector<12x128xf32>
    %cst = arith.constant dense<0.000000e+00> : vector<8x128xf32>
    %13 = tpu.matmul %5, %12, %cst {dimension_numbers = #tpu.dot_dimension_numbers<[1], [0], [0], [1], [0, 0, 1, 1], [], []>} : vector<8x12xf32>, vector<12x128xf32>, vector<8x128xf32> -> vector<8x128xf32>
    %c0_7 = arith.constant 0 : index
    %c0_8 = arith.constant 0 : index
    %14 = vector.load %arg4[%c0_7, %c0_8] : memref<8x1xf32, #tpu.memory_space<vmem>>, vector<8x1xf32>
    %15 = vector.broadcast %14 : vector<8x1xf32> to vector<8x128xf32>
    %16 = arith.addf %13, %15 : vector<8x128xf32>
    %cst_9 = arith.constant 0.000000e+00 : f32
    %17 = vector.broadcast %cst_9 : f32 to vector<8x128xf32>
    %18 = arith.maximumf %16, %17 : vector<8x128xf32>
    %c0_10 = arith.constant 0 : index
    %c0_11 = arith.constant 0 : index
    %19 = vector.load %arg5[%c0_10, %c0_11] : memref<8x24xf32, #tpu.memory_space<vmem>>, vector<8x24xf32>
    %c0_12 = arith.constant 0 : index
    %c0_13 = arith.constant 0 : index
    %20 = vector.load %arg17[%c0_12, %c0_13] : memref<8x2xf32, #tpu.memory_space<vmem>>, vector<8x2xf32>
    %21 = vector.extract_strided_slice %18 {offsets = [0, 0], sizes = [8, 126], strides = [1, 1]} : vector<8x128xf32> to vector<8x126xf32>
    %22 = tpu.concatenate %20, %21 in 1 : vector<8x2xf32>, vector<8x126xf32> -> vector<8x128xf32>
    %23 = vector.extract_strided_slice %20 {offsets = [0, 1], sizes = [8, 1], strides = [1, 1]} : vector<8x2xf32> to vector<8x1xf32>
    %24 = vector.extract_strided_slice %18 {offsets = [0, 0], sizes = [8, 127], strides = [1, 1]} : vector<8x128xf32> to vector<8x127xf32>
    %25 = tpu.concatenate %23, %24 in 1 : vector<8x1xf32>, vector<8x127xf32> -> vector<8x128xf32>
    %26 = tpu.concatenate %22, %25, %18 in 0 : vector<8x128xf32>, vector<8x128xf32>, vector<8x128xf32> -> vector<24x128xf32>
    %cst_14 = arith.constant dense<0.000000e+00> : vector<8x128xf32>
    %27 = tpu.matmul %19, %26, %cst_14 {dimension_numbers = #tpu.dot_dimension_numbers<[1], [0], [0], [1], [0, 0, 1, 1], [], []>} : vector<8x24xf32>, vector<24x128xf32>, vector<8x128xf32> -> vector<8x128xf32>
    %c0_15 = arith.constant 0 : index
    %c0_16 = arith.constant 0 : index
    %28 = vector.load %arg6[%c0_15, %c0_16] : memref<8x1xf32, #tpu.memory_space<vmem>>, vector<8x1xf32>
    %29 = vector.broadcast %28 : vector<8x1xf32> to vector<8x128xf32>
    %30 = arith.addf %27, %29 : vector<8x128xf32>
    %cst_17 = arith.constant 0.000000e+00 : f32
    %31 = vector.broadcast %cst_17 : f32 to vector<8x128xf32>
    %32 = arith.maximumf %30, %31 : vector<8x128xf32>
    %c0_18 = arith.constant 0 : index
    %c0_19 = arith.constant 0 : index
    %33 = vector.load %arg7[%c0_18, %c0_19] : memref<8x4xf32, #tpu.memory_space<vmem>>, vector<8x4xf32>
    %cst_20 = arith.constant dense<0.000000e+00> : vector<8x128xf32>
    %34 = tpu.matmul %33, %4, %cst_20 {dimension_numbers = #tpu.dot_dimension_numbers<[1], [0], [0], [1], [0, 0, 1, 1], [], []>} : vector<8x4xf32>, vector<4x128xf32>, vector<8x128xf32> -> vector<8x128xf32>
    %c0_21 = arith.constant 0 : index
    %c0_22 = arith.constant 0 : index
    %35 = vector.load %arg8[%c0_21, %c0_22] : memref<8x1xf32, #tpu.memory_space<vmem>>, vector<8x1xf32>
    %36 = vector.broadcast %35 : vector<8x1xf32> to vector<8x128xf32>
    %37 = arith.addf %34, %36 : vector<8x128xf32>
    %38 = vector.extract_strided_slice %4 {offsets = [0, 126], sizes = [4, 2], strides = [1, 1]} : vector<4x128xf32> to vector<4x2xf32>
    %c0_23 = arith.constant 0 : index
    %c0_24 = arith.constant 0 : index
    %39 = vector.load %arg16[%c0_23, %c0_24] : memref<4x2xf32, #tpu.memory_space<vmem>>, vector<4x2xf32>
    tpu.vector_store %arg16[%c0_23, %c0_24], %38 {strides = array<i32>} : memref<4x2xf32, #tpu.memory_space<vmem>>, vector<4x2xf32>,
    %40 = vector.extract_strided_slice %18 {offsets = [0, 126], sizes = [8, 2], strides = [1, 1]} : vector<8x128xf32> to vector<8x2xf32>
    %c0_25 = arith.constant 0 : index
    %c0_26 = arith.constant 0 : index
    %41 = vector.load %arg17[%c0_25, %c0_26] : memref<8x2xf32, #tpu.memory_space<vmem>>, vector<8x2xf32>
    tpu.vector_store %arg17[%c0_25, %c0_26], %40 {strides = array<i32>} : memref<8x2xf32, #tpu.memory_space<vmem>>, vector<8x2xf32>,
    %42 = arith.addf %32, %37 : vector<8x128xf32>
    %cst_27 = arith.constant 0.000000e+00 : f32
    %43 = vector.broadcast %cst_27 : f32 to vector<8x128xf32>
    %44 = arith.maximumf %42, %43 : vector<8x128xf32>
    %c0_28 = arith.constant 0 : index
    %c0_29 = arith.constant 0 : index
    %45 = vector.load %arg9[%c0_28, %c0_29] : memref<8x24xf32, #tpu.memory_space<vmem>>, vector<8x24xf32>
    %c0_30 = arith.constant 0 : index
    %c0_31 = arith.constant 0 : index
    %46 = vector.load %arg18[%c0_30, %c0_31] : memref<8x4xf32, #tpu.memory_space<vmem>>, vector<8x4xf32>
    %47 = vector.extract_strided_slice %44 {offsets = [0, 0], sizes = [8, 124], strides = [1, 1]} : vector<8x128xf32> to vector<8x124xf32>
    %48 = tpu.concatenate %46, %47 in 1 : vector<8x4xf32>, vector<8x124xf32> -> vector<8x128xf32>
    %49 = vector.extract_strided_slice %46 {offsets = [0, 2], sizes = [8, 2], strides = [1, 1]} : vector<8x4xf32> to vector<8x2xf32>
    %50 = vector.extract_strided_slice %44 {offsets = [0, 0], sizes = [8, 126], strides = [1, 1]} : vector<8x128xf32> to vector<8x126xf32>
    %51 = tpu.concatenate %49, %50 in 1 : vector<8x2xf32>, vector<8x126xf32> -> vector<8x128xf32>
    %52 = tpu.concatenate %48, %51, %44 in 0 : vector<8x128xf32>, vector<8x128xf32>, vector<8x128xf32> -> vector<24x128xf32>
    %cst_32 = arith.constant dense<0.000000e+00> : vector<8x128xf32>
    %53 = tpu.matmul %45, %52, %cst_32 {dimension_numbers = #tpu.dot_dimension_numbers<[1], [0], [0], [1], [0, 0, 1, 1], [], []>} : vector<8x24xf32>, vector<24x128xf32>, vector<8x128xf32> -> vector<8x128xf32>
    %c0_33 = arith.constant 0 : index
    %c0_34 = arith.constant 0 : index
    %54 = vector.load %arg10[%c0_33, %c0_34] : memref<8x1xf32, #tpu.memory_space<vmem>>, vector<8x1xf32>
    %55 = vector.broadcast %54 : vector<8x1xf32> to vector<8x128xf32>
    %56 = arith.addf %53, %55 : vector<8x128xf32>
    %cst_35 = arith.constant 0.000000e+00 : f32
    %57 = vector.broadcast %cst_35 : f32 to vector<8x128xf32>
    %58 = arith.maximumf %56, %57 : vector<8x128xf32>
    %c0_36 = arith.constant 0 : index
    %c0_37 = arith.constant 0 : index
    %59 = vector.load %arg11[%c0_36, %c0_37] : memref<8x24xf32, #tpu.memory_space<vmem>>, vector<8x24xf32>
    %c0_38 = arith.constant 0 : index
    %c0_39 = arith.constant 0 : index
    %60 = vector.load %arg19[%c0_38, %c0_39] : memref<8x4xf32, #tpu.memory_space<vmem>>, vector<8x4xf32>
    %61 = vector.extract_strided_slice %58 {offsets = [0, 0], sizes = [8, 124], strides = [1, 1]} : vector<8x128xf32> to vector<8x124xf32>
    %62 = tpu.concatenate %60, %61 in 1 : vector<8x4xf32>, vector<8x124xf32> -> vector<8x128xf32>
    %63 = vector.extract_strided_slice %60 {offsets = [0, 2], sizes = [8, 2], strides = [1, 1]} : vector<8x4xf32> to vector<8x2xf32>
    %64 = vector.extract_strided_slice %58 {offsets = [0, 0], sizes = [8, 126], strides = [1, 1]} : vector<8x128xf32> to vector<8x126xf32>
    %65 = tpu.concatenate %63, %64 in 1 : vector<8x2xf32>, vector<8x126xf32> -> vector<8x128xf32>
    %66 = tpu.concatenate %62, %65, %58 in 0 : vector<8x128xf32>, vector<8x128xf32>, vector<8x128xf32> -> vector<24x128xf32>
    %cst_40 = arith.constant dense<0.000000e+00> : vector<8x128xf32>
    %67 = tpu.matmul %59, %66, %cst_40 {dimension_numbers = #tpu.dot_dimension_numbers<[1], [0], [0], [1], [0, 0, 1, 1], [], []>} : vector<8x24xf32>, vector<24x128xf32>, vector<8x128xf32> -> vector<8x128xf32>
    %c0_41 = arith.constant 0 : index
    %c0_42 = arith.constant 0 : index
    %68 = vector.load %arg12[%c0_41, %c0_42] : memref<8x1xf32, #tpu.memory_space<vmem>>, vector<8x1xf32>
    %69 = vector.broadcast %68 : vector<8x1xf32> to vector<8x128xf32>
    %70 = arith.addf %67, %69 : vector<8x128xf32>
    %cst_43 = arith.constant 0.000000e+00 : f32
    %71 = vector.broadcast %cst_43 : f32 to vector<8x128xf32>
    %72 = arith.maximumf %70, %71 : vector<8x128xf32>
    %73 = vector.extract_strided_slice %44 {offsets = [0, 124], sizes = [8, 4], strides = [1, 1]} : vector<8x128xf32> to vector<8x4xf32>
    %c0_44 = arith.constant 0 : index
    %c0_45 = arith.constant 0 : index
    %74 = vector.load %arg18[%c0_44, %c0_45] : memref<8x4xf32, #tpu.memory_space<vmem>>, vector<8x4xf32>
    tpu.vector_store %arg18[%c0_44, %c0_45], %73 {strides = array<i32>} : memref<8x4xf32, #tpu.memory_space<vmem>>, vector<8x4xf32>,
    %75 = vector.extract_strided_slice %58 {offsets = [0, 124], sizes = [8, 4], strides = [1, 1]} : vector<8x128xf32> to vector<8x4xf32>
    %c0_46 = arith.constant 0 : index
    %c0_47 = arith.constant 0 : index
    %76 = vector.load %arg19[%c0_46, %c0_47] : memref<8x4xf32, #tpu.memory_space<vmem>>, vector<8x4xf32>
    tpu.vector_store %arg19[%c0_46, %c0_47], %75 {strides = array<i32>} : memref<8x4xf32, #tpu.memory_space<vmem>>, vector<8x4xf32>,
    %77 = arith.addf %72, %44 : vector<8x128xf32>
    %cst_48 = arith.constant 0.000000e+00 : f32
    %78 = vector.broadcast %cst_48 : f32 to vector<8x128xf32>
    %79 = arith.maximumf %77, %78 : vector<8x128xf32>
    %c0_49 = arith.constant 0 : index
    %c0_50 = arith.constant 0 : index
    %80 = vector.load %arg13[%c0_49, %c0_50] : memref<5x8xf32, #tpu.memory_space<vmem>>, vector<5x8xf32>
    %cst_51 = arith.constant dense<0.000000e+00> : vector<5x128xf32>
    %81 = tpu.matmul %80, %79, %cst_51 {dimension_numbers = #tpu.dot_dimension_numbers<[1], [0], [0], [1], [0, 0, 1, 1], [], []>} : vector<5x8xf32>, vector<8x128xf32>, vector<5x128xf32> -> vector<5x128xf32>
    %c0_52 = arith.constant 0 : index
    %c0_53 = arith.constant 0 : index
    %82 = vector.load %arg14[%c0_52, %c0_53] : memref<5x1xf32, #tpu.memory_space<vmem>>, vector<5x1xf32>
    %83 = vector.broadcast %82 : vector<5x1xf32> to vector<5x128xf32>
    %84 = arith.addf %81, %83 : vector<5x128xf32>
    %c0_54 = arith.constant 0 : index
    %c0_55 = arith.constant 0 : index
    %c0_56 = arith.constant 0 : index
    %85 = vector.load %arg15[%c0_54, %c0_55, %c0_56] : memref<1x5x128xf32, #tpu.memory_space<vmem>>, vector<1x5x128xf32>
    %86 = vector.shape_cast %85 : vector<1x5x128xf32> to vector<5x128xf32>
    %87 = vector.shape_cast %84 : vector<5x128xf32> to vector<1x5x128xf32>
    tpu.vector_store %arg15[%c0_54, %c0_55, %c0_56], %87 {strides = array<i32>} : memref<1x5x128xf32, #tpu.memory_space<vmem>>, vector<1x5x128xf32>,
    return
  }
  func.func @transform_0(%arg0: i32, %arg1: i32) -> (i32, i32, i32) {
    %c0_i32 = arith.constant 0 : i32
    %c0_i32_0 = arith.constant 0 : i32
    return %arg0, %c0_i32, %arg1 : i32, i32, i32
  }
  func.func @transform_1(%arg0: i32, %arg1: i32) -> (i32, i32) {
    %c0_i32 = arith.constant 0 : i32
    %c0_i32_0 = arith.constant 0 : i32
    %c0_i32_1 = arith.constant 0 : i32
    return %c0_i32, %c0_i32_0 : i32, i32
  }
  func.func @transform_2(%arg0: i32, %arg1: i32) -> (i32, i32) {
    %c0_i32 = arith.constant 0 : i32
    %c0_i32_0 = arith.constant 0 : i32
    %c0_i32_1 = arith.constant 0 : i32
    return %c0_i32, %c0_i32_0 : i32, i32
  }
  func.func @transform_3(%arg0: i32, %arg1: i32) -> (i32, i32) {
    %c0_i32 = arith.constant 0 : i32
    %c0_i32_0 = arith.constant 0 : i32
    %c0_i32_1 = arith.constant 0 : i32
    return %c0_i32, %c0_i32_0 : i32, i32
  }
  func.func @transform_4(%arg0: i32, %arg1: i32) -> (i32, i32) {
    %c0_i32 = arith.constant 0 : i32
    %c0_i32_0 = arith.constant 0 : i32
    %c0_i32_1 = arith.constant 0 : i32
    return %c0_i32, %c0_i32_0 : i32, i32
  }
  func.func @transform_5(%arg0: i32, %arg1: i32) -> (i32, i32) {
    %c0_i32 = arith.constant 0 : i32
    %c0_i32_0 = arith.constant 0 : i32
    %c0_i32_1 = arith.constant 0 : i32
    return %c0_i32, %c0_i32_0 : i32, i32
  }
  func.func @transform_6(%arg0: i32, %arg1: i32) -> (i32, i32) {
    %c0_i32 = arith.constant 0 : i32
    %c0_i32_0 = arith.constant 0 : i32
    %c0_i32_1 = arith.constant 0 : i32
    return %c0_i32, %c0_i32_0 : i32, i32
  }
  func.func @transform_7(%arg0: i32, %arg1: i32) -> (i32, i32) {
    %c0_i32 = arith.constant 0 : i32
    %c0_i32_0 = arith.constant 0 : i32
    %c0_i32_1 = arith.constant 0 : i32
    return %c0_i32, %c0_i32_0 : i32, i32
  }
  func.func @transform_8(%arg0: i32, %arg1: i32) -> (i32, i32) {
    %c0_i32 = arith.constant 0 : i32
    %c0_i32_0 = arith.constant 0 : i32
    %c0_i32_1 = arith.constant 0 : i32
    return %c0_i32, %c0_i32_0 : i32, i32
  }
  func.func @transform_9(%arg0: i32, %arg1: i32) -> (i32, i32) {
    %c0_i32 = arith.constant 0 : i32
    %c0_i32_0 = arith.constant 0 : i32
    %c0_i32_1 = arith.constant 0 : i32
    return %c0_i32, %c0_i32_0 : i32, i32
  }
  func.func @transform_10(%arg0: i32, %arg1: i32) -> (i32, i32) {
    %c0_i32 = arith.constant 0 : i32
    %c0_i32_0 = arith.constant 0 : i32
    %c0_i32_1 = arith.constant 0 : i32
    return %c0_i32, %c0_i32_0 : i32, i32
  }
  func.func @transform_11(%arg0: i32, %arg1: i32) -> (i32, i32) {
    %c0_i32 = arith.constant 0 : i32
    %c0_i32_0 = arith.constant 0 : i32
    %c0_i32_1 = arith.constant 0 : i32
    return %c0_i32, %c0_i32_0 : i32, i32
  }
  func.func @transform_12(%arg0: i32, %arg1: i32) -> (i32, i32) {
    %c0_i32 = arith.constant 0 : i32
    %c0_i32_0 = arith.constant 0 : i32
    %c0_i32_1 = arith.constant 0 : i32
    return %c0_i32, %c0_i32_0 : i32, i32
  }
  func.func @transform_13(%arg0: i32, %arg1: i32) -> (i32, i32, i32) {
    %c0_i32 = arith.constant 0 : i32
    %c0_i32_0 = arith.constant 0 : i32
    return %arg0, %c0_i32, %arg1 : i32, i32, i32
  }
}

</mosaic_0001>

<llo_original>
// kernel: tpu_custom_call.1
$region0: #{tpu_custom_call.1}
  #allocation0 [shape = 'u32[]', space=smem, size = 0x4, offset = 0x4, fixed_abs, tag = 'smem constant byte address 0x4 - core index']
  #allocation1 [shape = 'u32[144,128]{1,0:T(1,128)}', space=vmem, size = 0x12000, scoped, tag = 'internal scratch']
  #allocation2 [shape = 'f32[4,2]{1,0:T(4,128)}', space=vmem, size = 0x800, scoped, tag = 'scratch operand']
  #allocation3 [shape = 'f32[8,2]{1,0:T(8,128)}', space=vmem, size = 0x1000, scoped, tag = 'scratch operand']
  #allocation4 [shape = 'f32[8,4]{1,0:T(8,128)}', space=vmem, size = 0x1000, scoped, tag = 'scratch operand']
  #allocation5 [shape = 'f32[8,4]{1,0:T(8,128)}', space=vmem, size = 0x1000, scoped, tag = 'scratch operand']
  %s0 = inlined_call_operand.vmem [shape: f32[2,4,128], index: 0, kind: input, shape index: {}]
  %s1 = inlined_call_operand.vmem [shape: f32[8,12], index: 1, kind: input, shape index: {}]
  %s2 = inlined_call_operand.vmem [shape: f32[8,1], index: 2, kind: input, shape index: {}]
  %s3 = inlined_call_operand.vmem [shape: f32[8,24], index: 3, kind: input, shape index: {}]
  %s4 = inlined_call_operand.vmem [shape: f32[8,1], index: 4, kind: input, shape index: {}]
  %s5 = inlined_call_operand.vmem [shape: f32[8,4], index: 5, kind: input, shape index: {}]
  %s6 = inlined_call_operand.vmem [shape: f32[8,1], index: 6, kind: input, shape index: {}]
  %s7 = inlined_call_operand.vmem [shape: f32[8,24], index: 7, kind: input, shape index: {}]
  %s8 = inlined_call_operand.vmem [shape: f32[8,1], index: 8, kind: input, shape index: {}]
  %s9 = inlined_call_operand.vmem [shape: f32[8,24], index: 9, kind: input, shape index: {}]
  %s10 = inlined_call_operand.vmem [shape: f32[8,1], index: 10, kind: input, shape index: {}]
  %s11 = inlined_call_operand.vmem [shape: f32[5,8], index: 11, kind: input, shape index: {}]
  %s12 = inlined_call_operand.vmem [shape: f32[5,1], index: 12, kind: input, shape index: {}]
  %s13 = inlined_call_operand.vmem [shape: f32[2,5,128], index: 13, kind: output, shape index: {}]
  %s14 = sld [smem:[#allocation0]]
  $region89: #{tpu_custom_call.1} parent=0
    _
  %s16 = ssub.s32 1, %s14
  %s17 = scalar_select 0, %s16, %s14
  loop: start=0, step=1, limit=4
  $region2: #{tpu_custom_call.1} parent=0 // loop_pre_header
    _
  $region3: #{tpu_custom_call.1} parent=0 // loop_header
    %s19 = sphi 0, %s23
    %p20 = scmp.ge.s32.totalorder %s19, 4
    %s26 = sphi 0, %s38
    %s27 = sphi 0, %s34
    %s28 = sphi 0, %s26
    %s29 = sphi 0, %s27
    %s30 = sphi 0, %s28
    %s31 = sphi 0, %s29
    %s43 = sphi 0, %s45
    %s46 = sphi 0, %s43
    %s47 = sphi 0, %s46
    %s63 = sphi 0, %s47
    %s67 = sphi 0, %s67
    %s69 = sphi 0, %s67
    %s70 = sphi 0, %s69
    %s84 = sphi 0, %s70
    %s88 = sphi 0, %s88
    %s90 = sphi 0, %s88
    %s91 = sphi 0, %s90
    %s105 = sphi 0, %s91
    %s109 = sphi 0, %s109
    %s111 = sphi 0, %s109
    %s112 = sphi 0, %s111
    %s126 = sphi 0, %s112
    %s130 = sphi 0, %s130
    %s132 = sphi 0, %s130
    %s133 = sphi 0, %s132
    %s147 = sphi 0, %s133
    %s151 = sphi 0, %s151
    %s153 = sphi 0, %s151
    %s154 = sphi 0, %s153
    %s168 = sphi 0, %s154
    %s172 = sphi 0, %s172
    %s174 = sphi 0, %s172
    %s175 = sphi 0, %s174
    %s189 = sphi 0, %s175
    %s193 = sphi 0, %s193
    %s195 = sphi 0, %s193
    %s196 = sphi 0, %s195
    %s210 = sphi 0, %s196
    %s214 = sphi 0, %s214
    %s216 = sphi 0, %s214
    %s217 = sphi 0, %s216
    %s231 = sphi 0, %s217
    %s235 = sphi 0, %s235
    %s237 = sphi 0, %s235
    %s238 = sphi 0, %s237
    %s252 = sphi 0, %s238
    %s256 = sphi 0, %s256
    %s258 = sphi 0, %s256
    %s259 = sphi 0, %s258
    %s273 = sphi 0, %s259
    %s277 = sphi 0, %s277
    %s279 = sphi 0, %s277
    %s280 = sphi 0, %s279
    %s294 = sphi 0, %s280
    %s298 = sphi 0, %s298
    %s300 = sphi 0, %s298
    %s301 = sphi 0, %s300
    %s315 = sphi 0, %s301
    %s323 = sphi 0, %s325
    %s326 = sphi 0, %s323
    %s327 = sphi 0, %s326
    %s343 = sphi 0, %s327
  $region4: #{tpu_custom_call.1} parent=0 // loop_header_branch
    %22 = sbr.rel (%p20) target = $region8
  $region5: #{tpu_custom_call.1} parent=0 // loop_body
    %s24 = ssub.s32 %s19, 1
    %s25 = ssub.s32 %s19, 2
    %s32 = sadd.s32 1, %s27
    %p33 = scmp.ge.s32.totalorder %s32, 1
    %s34 = scalar_select %p33, 0, %s32
    %s35 = sadd.s32 1, %s26
    %s36 = scalar_select %p33, %s35, %s26
    %p37 = scmp.ge.s32.totalorder %s36, 2
    %s38 = scalar_select %p37, 0, %s36
    %s39 = ssub.s32 %s26, %s38
    %s40 = ssub.s32 %s27, %s34
    %s41 = sor.u32 %s39, %s40
    %p42 = scmp.eq.s32.totalorder %s41, 0
    %s44 = sadd.s32 %s43, 1
    %s45 = scalar_select %p42, %s43, %s44
    %p48 = pneg %p42
    %p49 = scmp.eq.s32.totalorder %s19, 1
    %p50 = por %p48, %p49
    %p51 = scmp.ne.s32.totalorder %s43, %s46
    %p52 = scmp.eq.s32.totalorder %s19, 0
    %p53 = por %p51, %p52
    %p54 = scmp.ne.s32.totalorder %s43, %s46
    %p55 = scmp.eq.s32.totalorder %s24, 1
    %p56 = por %p54, %p55
    %p57 = scmp.ne.s32.totalorder %s46, %s47
    %p58 = scmp.eq.s32.totalorder %s24, 0
    %p59 = por %p57, %p58
    %p60 = scmp.ne.s32.totalorder %s46, %s47
    %p61 = scmp.eq.s32.totalorder %s25, 1
    %p62 = por %p60, %p61
    %p64 = scmp.ne.s32.totalorder %s47, %s63
    %p65 = scmp.eq.s32.totalorder %s25, 0
    %p66 = por %p64, %p65
    %s68 = sadd.s32 %s67, 1
    %p71 = scmp.eq.s32.totalorder %s19, 1
    %p72 = scmp.ne.s32.totalorder %s67, %s69
    %p73 = scmp.eq.s32.totalorder %s19, 0
    %p74 = por %p72, %p73
    %p75 = scmp.ne.s32.totalorder %s67, %s69
    %p76 = scmp.eq.s32.totalorder %s24, 1
    %p77 = por %p75, %p76
    %p78 = scmp.ne.s32.totalorder %s69, %s70
    %p79 = scmp.eq.s32.totalorder %s24, 0
    %p80 = por %p78, %p79
    %p81 = scmp.ne.s32.totalorder %s69, %s70
    %p82 = scmp.eq.s32.totalorder %s25, 1
    %p83 = por %p81, %p82
    %p85 = scmp.ne.s32.totalorder %s70, %s84
    %p86 = scmp.eq.s32.totalorder %s25, 0
    %p87 = por %p85, %p86
    %s89 = sadd.s32 %s88, 1
    %p92 = scmp.eq.s32.totalorder %s19, 1
    %p93 = scmp.ne.s32.totalorder %s88, %s90
    %p94 = scmp.eq.s32.totalorder %s19, 0
    %p95 = por %p93, %p94
    %p96 = scmp.ne.s32.totalorder %s88, %s90
    %p97 = scmp.eq.s32.totalorder %s24, 1
    %p98 = por %p96, %p97
    %p99 = scmp.ne.s32.totalorder %s90, %s91
    %p100 = scmp.eq.s32.totalorder %s24, 0
    %p101 = por %p99, %p100
    %p102 = scmp.ne.s32.totalorder %s90, %s91
    %p103 = scmp.eq.s32.totalorder %s25, 1
    %p104 = por %p102, %p103
    %p106 = scmp.ne.s32.totalorder %s91, %s105
    %p107 = scmp.eq.s32.totalorder %s25, 0
    %p108 = por %p106, %p107
    %s110 = sadd.s32 %s109, 1
    %p113 = scmp.eq.s32.totalorder %s19, 1
    %p114 = scmp.ne.s32.totalorder %s109, %s111
    %p115 = scmp.eq.s32.totalorder %s19, 0
    %p116 = por %p114, %p115
    %p117 = scmp.ne.s32.totalorder %s109, %s111
    %p118 = scmp.eq.s32.totalorder %s24, 1
    %p119 = por %p117, %p118
    %p120 = scmp.ne.s32.totalorder %s111, %s112
    %p121 = scmp.eq.s32.totalorder %s24, 0
    %p122 = por %p120, %p121
    %p123 = scmp.ne.s32.totalorder %s111, %s112
    %p124 = scmp.eq.s32.totalorder %s25, 1
    %p125 = por %p123, %p124
    %p127 = scmp.ne.s32.totalorder %s112, %s126
    %p128 = scmp.eq.s32.totalorder %s25, 0
    %p129 = por %p127, %p128
    %s131 = sadd.s32 %s130, 1
    %p134 = scmp.eq.s32.totalorder %s19, 1
    %p135 = scmp.ne.s32.totalorder %s130, %s132
    %p136 = scmp.eq.s32.totalorder %s19, 0
    %p137 = por %p135, %p136
    %p138 = scmp.ne.s32.totalorder %s130, %s132
    %p139 = scmp.eq.s32.totalorder %s24, 1
    %p140 = por %p138, %p139
    %p141 = scmp.ne.s32.totalorder %s132, %s133
    %p142 = scmp.eq.s32.totalorder %s24, 0
    %p143 = por %p141, %p142
    %p144 = scmp.ne.s32.totalorder %s132, %s133
    %p145 = scmp.eq.s32.totalorder %s25, 1
    %p146 = por %p144, %p145
    %p148 = scmp.ne.s32.totalorder %s133, %s147
    %p149 = scmp.eq.s32.totalorder %s25, 0
    %p150 = por %p148, %p149
    %s152 = sadd.s32 %s151, 1
    %p155 = scmp.eq.s32.totalorder %s19, 1
    %p156 = scmp.ne.s32.totalorder %s151, %s153
    %p157 = scmp.eq.s32.totalorder %s19, 0
    %p158 = por %p156, %p157
    %p159 = scmp.ne.s32.totalorder %s151, %s153
    %p160 = scmp.eq.s32.totalorder %s24, 1
    %p161 = por %p159, %p160
    %p162 = scmp.ne.s32.totalorder %s153, %s154
    %p163 = scmp.eq.s32.totalorder %s24, 0
    %p164 = por %p162, %p163
    %p165 = scmp.ne.s32.totalorder %s153, %s154
    %p166 = scmp.eq.s32.totalorder %s25, 1
    %p167 = por %p165, %p166
    %p169 = scmp.ne.s32.totalorder %s154, %s168
    %p170 = scmp.eq.s32.totalorder %s25, 0
    %p171 = por %p169, %p170
    %s173 = sadd.s32 %s172, 1
    %p176 = scmp.eq.s32.totalorder %s19, 1
    %p177 = scmp.ne.s32.totalorder %s172, %s174
    %p178 = scmp.eq.s32.totalorder %s19, 0
    %p179 = por %p177, %p178
    %p180 = scmp.ne.s32.totalorder %s172, %s174
    %p181 = scmp.eq.s32.totalorder %s24, 1
    %p182 = por %p180, %p181
    %p183 = scmp.ne.s32.totalorder %s174, %s175
    %p184 = scmp.eq.s32.totalorder %s24, 0
    %p185 = por %p183, %p184
    %p186 = scmp.ne.s32.totalorder %s174, %s175
    %p187 = scmp.eq.s32.totalorder %s25, 1
    %p188 = por %p186, %p187
    %p190 = scmp.ne.s32.totalorder %s175, %s189
    %p191 = scmp.eq.s32.totalorder %s25, 0
    %p192 = por %p190, %p191
    %s194 = sadd.s32 %s193, 1
    %p197 = scmp.eq.s32.totalorder %s19, 1
    %p198 = scmp.ne.s32.totalorder %s193, %s195
    %p199 = scmp.eq.s32.totalorder %s19, 0
    %p200 = por %p198, %p199
    %p201 = scmp.ne.s32.totalorder %s193, %s195
    %p202 = scmp.eq.s32.totalorder %s24, 1
    %p203 = por %p201, %p202
    %p204 = scmp.ne.s32.totalorder %s195, %s196
    %p205 = scmp.eq.s32.totalorder %s24, 0
    %p206 = por %p204, %p205
    %p207 = scmp.ne.s32.totalorder %s195, %s196
    %p208 = scmp.eq.s32.totalorder %s25, 1
    %p209 = por %p207, %p208
    %p211 = scmp.ne.s32.totalorder %s196, %s210
    %p212 = scmp.eq.s32.totalorder %s25, 0
    %p213 = por %p211, %p212
    %s215 = sadd.s32 %s214, 1
    %p218 = scmp.eq.s32.totalorder %s19, 1
    %p219 = scmp.ne.s32.totalorder %s214, %s216
    %p220 = scmp.eq.s32.totalorder %s19, 0
    %p221 = por %p219, %p220
    %p222 = scmp.ne.s32.totalorder %s214, %s216
    %p223 = scmp.eq.s32.totalorder %s24, 1
    %p224 = por %p222, %p223
    %p225 = scmp.ne.s32.totalorder %s216, %s217
    %p226 = scmp.eq.s32.totalorder %s24, 0
    %p227 = por %p225, %p226
    %p228 = scmp.ne.s32.totalorder %s216, %s217
    %p229 = scmp.eq.s32.totalorder %s25, 1
    %p230 = por %p228, %p229
    %p232 = scmp.ne.s32.totalorder %s217, %s231
    %p233 = scmp.eq.s32.totalorder %s25, 0
    %p234 = por %p232, %p233
    %s236 = sadd.s32 %s235, 1
    %p239 = scmp.eq.s32.totalorder %s19, 1
    %p240 = scmp.ne.s32.totalorder %s235, %s237
    %p241 = scmp.eq.s32.totalorder %s19, 0
    %p242 = por %p240, %p241
    %p243 = scmp.ne.s32.totalorder %s235, %s237
    %p244 = scmp.eq.s32.totalorder %s24, 1
    %p245 = por %p243, %p244
    %p246 = scmp.ne.s32.totalorder %s237, %s238
    %p247 = scmp.eq.s32.totalorder %s24, 0
    %p248 = por %p246, %p247
    %p249 = scmp.ne.s32.totalorder %s237, %s238
    %p250 = scmp.eq.s32.totalorder %s25, 1
    %p251 = por %p249, %p250
    %p253 = scmp.ne.s32.totalorder %s238, %s252
    %p254 = scmp.eq.s32.totalorder %s25, 0
    %p255 = por %p253, %p254
    %s257 = sadd.s32 %s256, 1
    %p260 = scmp.eq.s32.totalorder %s19, 1
    %p261 = scmp.ne.s32.totalorder %s256, %s258
    %p262 = scmp.eq.s32.totalorder %s19, 0
    %p263 = por %p261, %p262
    %p264 = scmp.ne.s32.totalorder %s256, %s258
    %p265 = scmp.eq.s32.totalorder %s24, 1
    %p266 = por %p264, %p265
    %p267 = scmp.ne.s32.totalorder %s258, %s259
    %p268 = scmp.eq.s32.totalorder %s24, 0
    %p269 = por %p267, %p268
    %p270 = scmp.ne.s32.totalorder %s258, %s259
    %p271 = scmp.eq.s32.totalorder %s25, 1
    %p272 = por %p270, %p271
    %p274 = scmp.ne.s32.totalorder %s259, %s273
    %p275 = scmp.eq.s32.totalorder %s25, 0
    %p276 = por %p274, %p275
    %s278 = sadd.s32 %s277, 1
    %p281 = scmp.eq.s32.totalorder %s19, 1
    %p282 = scmp.ne.s32.totalorder %s277, %s279
    %p283 = scmp.eq.s32.totalorder %s19, 0
    %p284 = por %p282, %p283
    %p285 = scmp.ne.s32.totalorder %s277, %s279
    %p286 = scmp.eq.s32.totalorder %s24, 1
    %p287 = por %p285, %p286
    %p288 = scmp.ne.s32.totalorder %s279, %s280
    %p289 = scmp.eq.s32.totalorder %s24, 0
    %p290 = por %p288, %p289
    %p291 = scmp.ne.s32.totalorder %s279, %s280
    %p292 = scmp.eq.s32.totalorder %s25, 1
    %p293 = por %p291, %p292
    %p295 = scmp.ne.s32.totalorder %s280, %s294
    %p296 = scmp.eq.s32.totalorder %s25, 0
    %p297 = por %p295, %p296
    %s299 = sadd.s32 %s298, 1
    %p302 = scmp.eq.s32.totalorder %s19, 1
    %p303 = scmp.ne.s32.totalorder %s298, %s300
    %p304 = scmp.eq.s32.totalorder %s19, 0
    %p305 = por %p303, %p304
    %p306 = scmp.ne.s32.totalorder %s298, %s300
    %p307 = scmp.eq.s32.totalorder %s24, 1
    %p308 = por %p306, %p307
    %p309 = scmp.ne.s32.totalorder %s300, %s301
    %p310 = scmp.eq.s32.totalorder %s24, 0
    %p311 = por %p309, %p310
    %p312 = scmp.ne.s32.totalorder %s300, %s301
    %p313 = scmp.eq.s32.totalorder %s25, 1
    %p314 = por %p312, %p313
    %p316 = scmp.ne.s32.totalorder %s301, %s315
    %p317 = scmp.eq.s32.totalorder %s25, 0
    %p318 = por %p316, %p317
    %s319 = ssub.s32 %s26, %s38
    %s320 = ssub.s32 %s27, %s34
    %s321 = sor.u32 %s319, %s320
    %p322 = scmp.eq.s32.totalorder %s321, 0
    %s324 = sadd.s32 %s323, 1
    %s325 = scalar_select %p322, %s323, %s324
    %p328 = pneg %p322
    %p329 = scmp.eq.s32.totalorder %s19, 1
    %p330 = por %p328, %p329
    %p331 = scmp.ne.s32.totalorder %s323, %s326
    %p332 = scmp.eq.s32.totalorder %s19, 0
    %p333 = por %p331, %p332
    %p334 = scmp.ne.s32.totalorder %s323, %s326
    %p335 = scmp.eq.s32.totalorder %s24, 1
    %p336 = por %p334, %p335
    %p337 = scmp.ne.s32.totalorder %s326, %s327
    %p338 = scmp.eq.s32.totalorder %s24, 0
    %p339 = por %p337, %p338
    %p340 = scmp.ne.s32.totalorder %s326, %s327
    %p341 = scmp.eq.s32.totalorder %s25, 1
    %p342 = por %p340, %p341
    %p344 = scmp.ne.s32.totalorder %s327, %s343
    %p345 = scmp.eq.s32.totalorder %s25, 0
    %p346 = por %p344, %p345
    %p347 = scmp.le.s32.totalorder 1, %s19
    %p348 = scmp.lt.s32.totalorder %s19, 3
    %p349 = pnand %p347, %p348
    %p350 = pneg %p349
    // Predicated region
    $region9: #{tpu_custom_call.1} parent=5 // pred_check
      _
    $region10: #{tpu_custom_call.1} parent=5 // pred_check_branch
      %352 = sbr.rel (%p349) target = $region12
    $region11: #{tpu_custom_call.1} parent=5 // pred_region
      %s353 = ssub.s32 %s19, 1
      // Predicated region
      $region13: #{tpu_custom_call.1} parent=11 // pred_check
        %p354 = pneg %p80
      $region14: #{tpu_custom_call.1} parent=11 // pred_check_branch
        %356 = sbr.rel (%p354) target = $region16
      $region15: #{tpu_custom_call.1} parent=11 // pred_region
        _
      $region16: #{tpu_custom_call.1} parent=11 // pred_fallthru
        _
      // Predicated region
      $region17: #{tpu_custom_call.1} parent=11 // pred_check
        %p357 = pneg %p101
      $region18: #{tpu_custom_call.1} parent=11 // pred_check_branch
        %359 = sbr.rel (%p357) target = $region20
      $region19: #{tpu_custom_call.1} parent=11 // pred_region
        _
      $region20: #{tpu_custom_call.1} parent=11 // pred_fallthru
        _
      // Predicated region
      $region21: #{tpu_custom_call.1} parent=11 // pred_check
        %p360 = pneg %p122
      $region22: #{tpu_custom_call.1} parent=11 // pred_check_branch
        %362 = sbr.rel (%p360) target = $region24
      $region23: #{tpu_custom_call.1} parent=11 // pred_region
        _
      $region24: #{tpu_custom_call.1} parent=11 // pred_fallthru
        _
      // Predicated region
      $region25: #{tpu_custom_call.1} parent=11 // pred_check
        %p363 = pneg %p143
      $region26: #{tpu_custom_call.1} parent=11 // pred_check_branch
        %365 = sbr.rel (%p363) target = $region28
      $region27: #{tpu_custom_call.1} parent=11 // pred_region
        _
      $region28: #{tpu_custom_call.1} parent=11 // pred_fallthru
        _
      // Predicated region
      $region29: #{tpu_custom_call.1} parent=11 // pred_check
        %p366 = pneg %p164
      $region30: #{tpu_custom_call.1} parent=11 // pred_check_branch
        %368 = sbr.rel (%p366) target = $region32
      $region31: #{tpu_custom_call.1} parent=11 // pred_region
        _
      $region32: #{tpu_custom_call.1} parent=11 // pred_fallthru
        _
      // Predicated region
      $region33: #{tpu_custom_call.1} parent=11 // pred_check
        %p369 = pneg %p185
      $region34: #{tpu_custom_call.1} parent=11 // pred_check_branch
        %371 = sbr.rel (%p369) target = $region36
      $region35: #{tpu_custom_call.1} parent=11 // pred_region
        _
      $region36: #{tpu_custom_call.1} parent=11 // pred_fallthru
        _
      // Predicated region
      $region37: #{tpu_custom_call.1} parent=11 // pred_check
        %p372 = pneg %p206
      $region38: #{tpu_custom_call.1} parent=11 // pred_check_branch
        %374 = sbr.rel (%p372) target = $region40
      $region39: #{tpu_custom_call.1} parent=11 // pred_region
        _
      $region40: #{tpu_custom_call.1} parent=11 // pred_fallthru
        _
      // Predicated region
      $region41: #{tpu_custom_call.1} parent=11 // pred_check
        %p375 = pneg %p227
      $region42: #{tpu_custom_call.1} parent=11 // pred_check_branch
        %377 = sbr.rel (%p375) target = $region44
      $region43: #{tpu_custom_call.1} parent=11 // pred_region
        _
      $region44: #{tpu_custom_call.1} parent=11 // pred_fallthru
        _
      // Predicated region
      $region45: #{tpu_custom_call.1} parent=11 // pred_check
        %p378 = pneg %p248
      $region46: #{tpu_custom_call.1} parent=11 // pred_check_branch
        %380 = sbr.rel (%p378) target = $region48
      $region47: #{tpu_custom_call.1} parent=11 // pred_region
        _
      $region48: #{tpu_custom_call.1} parent=11 // pred_fallthru
        _
      // Predicated region
      $region49: #{tpu_custom_call.1} parent=11 // pred_check
        %p381 = pneg %p269
      $region50: #{tpu_custom_call.1} parent=11 // pred_check_branch
        %383 = sbr.rel (%p381) target = $region52
      $region51: #{tpu_custom_call.1} parent=11 // pred_region
        _
      $region52: #{tpu_custom_call.1} parent=11 // pred_fallthru
        _
      // Predicated region
      $region53: #{tpu_custom_call.1} parent=11 // pred_check
        %p384 = pneg %p290
      $region54: #{tpu_custom_call.1} parent=11 // pred_check_branch
        %386 = sbr.rel (%p384) target = $region56
      $region55: #{tpu_custom_call.1} parent=11 // pred_region
        _
      $region56: #{tpu_custom_call.1} parent=11 // pred_fallthru
        _
      // Predicated region
      $region57: #{tpu_custom_call.1} parent=11 // pred_check
        %p387 = pneg %p311
      $region58: #{tpu_custom_call.1} parent=11 // pred_check_branch
        %389 = sbr.rel (%p387) target = $region60
      $region59: #{tpu_custom_call.1} parent=11 // pred_region
        _
      $region60: #{tpu_custom_call.1} parent=11 // pred_fallthru
        _
    $region12: #{tpu_custom_call.1} parent=5 // pred_fallthru
      _
    %p390 = scmp.lt.s32.totalorder %s19, 2
    // Predicated region
    $region61: #{tpu_custom_call.1} parent=5 // pred_check
      %p391 = pneg %p390
    $region62: #{tpu_custom_call.1} parent=5 // pred_check_branch
      %393 = sbr.rel (%p391) target = $region64
    $region63: #{tpu_custom_call.1} parent=5 // pred_region
      // Predicated region
      $region65: #{tpu_custom_call.1} parent=63 // pred_check
        %p394 = pneg %p53
      $region66: #{tpu_custom_call.1} parent=63 // pred_check_branch
        %396 = sbr.rel (%p394) target = $region68
      $region67: #{tpu_custom_call.1} parent=63 // pred_region
        %p397 = scmp.lt.s32.totalorder %s26, 1
        %s398 = scalar_select %p397, %s26, 1
        %p399 = scmp.lt.s32.totalorder %s27, 0
        %s400 = scalar_select %p399, %s27, 0
        %s401 = sadd.s32 %s400, %s398
        %s402 = smul.addr %s401, 4
        %s403 = scalar_lea.vmem %s0, %s402
      $region68: #{tpu_custom_call.1} parent=63 // pred_fallthru
        _
    $region64: #{tpu_custom_call.1} parent=5 // pred_fallthru
      _
    %p404 = scmp.le.s32.totalorder 1, %s19
    %p405 = scmp.lt.s32.totalorder %s19, 3
    %p406 = pnand %p404, %p405
    %p407 = pneg %p406
    // Predicated region
    $region69: #{tpu_custom_call.1} parent=5 // pred_check
      _
    $region70: #{tpu_custom_call.1} parent=5 // pred_check_branch
      %409 = sbr.rel (%p406) target = $region72
    $region71: #{tpu_custom_call.1} parent=5 // pred_region
      %s410 = ssub.s32 %s19, 1
      %p411 = scmp.lt.s32.totalorder %s28, 1
      %s412 = scalar_select %p411, %s28, 1
      %p413 = scmp.lt.s32.totalorder %s29, 0
      %s414 = scalar_select %p413, %s29, 0
      %s415 = sadd.s32 %s414, %s412
      %s416 = smul.addr %s415, 4
      %s417 = scalar_lea.vmem %s0, %s416
      %p418 = pneg %p59
      %p419 = pneg %p56
      %p420 = pneg %p80
      %p421 = pneg %p77
      %p422 = pneg %p101
      %p423 = pneg %p98
      %p424 = pneg %p122
      %p425 = pneg %p119
      %p426 = pneg %p143
      %p427 = pneg %p140
      %p428 = pneg %p164
      %p429 = pneg %p161
      %p430 = pneg %p185
      %p431 = pneg %p182
      %p432 = pneg %p206
      %p433 = pneg %p203
      %p434 = pneg %p227
      %p435 = pneg %p224
      %p436 = pneg %p248
      %p437 = pneg %p245
      %p438 = pneg %p269
      %p439 = pneg %p266
      %p440 = pneg %p290
      %p441 = pneg %p287
      %p442 = pneg %p311
      %p443 = pneg %p308
      %p444 = pneg %p339
      %p445 = pneg %p336
      %p446 = scmp.lt.s32.totalorder %s28, 1
      %s447 = scalar_select %p446, %s28, 1
      %p448 = scmp.lt.s32.totalorder %s29, 0
      %s449 = scalar_select %p448, %s29, 0
      %s450 = sadd.s32 %s449, %s447
      %s451 = smul.addr %s450, 8
      %s452 = scalar_lea.vmem %s13, %s451
      %p453 = scmp.lt.s32.totalorder %s28, 1
      %s454 = scalar_select %p453, %s28, 1
      %p455 = scmp.lt.s32.totalorder %s29, 0
      %s456 = scalar_select %p455, %s29, 0
      %s457 = sadd.s32 %s456, %s454
      %s458 = smul.addr %s457, 4
      %s459 = scalar_lea.vmem %s0, %s458
      %p460 = scmp.lt.s32.totalorder %s28, 1
      %s461 = scalar_select %p460, %s28, 1
      %p462 = scmp.lt.s32.totalorder %s29, 0
      %s463 = scalar_select %p462, %s29, 0
      %s464 = sadd.s32 %s463, %s461
      %s465 = smul.addr %s464, 8
      %s466 = scalar_lea.vmem %s13, %s465
      %p467 = scmp.eq.s32.totalorder %s29, 0
      // Predicated region
      $region73: #{tpu_custom_call.1} parent=71 // pred_check
        %p468 = pneg %p467
      $region74: #{tpu_custom_call.1} parent=71 // pred_check_branch
        %470 = sbr.rel (%p468) target = $region76
      $region75: #{tpu_custom_call.1} parent=71 // pred_region
        %vm471 = vcmask 11264
        %472 = vst.msk [vmem:[#allocation2] sm:$0xf] %vm471, 0.0
        %vm473 = vcmask 15360
        %474 = vst.msk [vmem:[#allocation3] sm:$0xff] %vm473, 0.0
        %vm475 = vcmask 31744
        %476 = vst.msk [vmem:[#allocation4] sm:$0xff] %vm475, 0.0
        %477 = vst.msk [vmem:[#allocation5] sm:$0xff] %vm475, 0.0
      $region76: #{tpu_custom_call.1} parent=71 // pred_fallthru
        _
      %v478 = vld [vmem:[%s459] sm:$0xf]
      %v479 = vld [vmem:[%s1] sm:$0xff]
      %v480 = vld [vmem:[#allocation2] sm:$0xf]
      %482 = vrot.lane.b32.xlu0 %v478, 2
      %v483 = vpop.permute.xlu0 %482
      %vm485 = vcmask 15360
      %v486 = vsel %vm485, %v480, %v483
      %488 = vrot.lane.b32.xlu0 %v480, 127
      %v489 = vpop.permute.xlu0 %488
      %491 = vrot.lane.b32.xlu0 %v478, 1
      %v492 = vpop.permute.xlu0 %491
      %vm494 = vcmask 7168
      %v495 = vsel %vm494, %v489, %v492
      %v497 = vrot.slane %v495, 4
      %vm499 = vcmask 1043456
      %v500 = vsel %vm499, %v486, %v497
      %v501 = vld [vmem:[%s2] sm:$0xff]
      %503 = vset.pattern.permute.xlu0 0
      %504 = vperm.xlu0 %503, %v501
      %v505 = vpop.permute.xlu0 %504
      %vm507 = vcmask 97280
      %v509 = vsel %vm507, %v479, 0
      %v511 = vsel %vm499, %v478, 0
      %513 = vmatprep.subr.mxu0 0.0
      %514 = vmatpush1.msra.mxu0 %v500
      %515 = vmatprep.subr.mxu0 0.0
      %516 = vmatpush1.msra.mxu0 %v511
      %517 = vmatprep.subr.mxu0 0.0
      %518 = vmatpush1.msra.mxu0 0.0
      %519 = vmatprep.subr.mxu0 0.0
      %520 = vmatpush1.msra.mxu0 0.0
      %521 = vmatprep.subr.mxu0 0.0
      %522 = vmatpush1.msra.mxu0 0.0
      %523 = vmatprep.subr.mxu0 0.0
      %524 = vmatpush1.msra.mxu0 0.0
      %525 = vmatprep.subr.mxu0 0.0
      %526 = vmatpush1.msra.mxu0 0.0
      %527 = vmatprep.subr.mxu0 0.0
      %528 = vmatpush1.msra.mxu0 0.0
      %529 = vmatprep.subr.mxu0 0.0
      %530 = vmatpush1.msra.mxu0 0.0
      %531 = vmatprep.subr.mxu0 0.0
      %532 = vmatpush1.msra.mxu0 0.0
      %533 = vmatprep.subr.mxu0 0.0
      %534 = vmatpush1.msra.mxu0 0.0
      %535 = vmatprep.subr.mxu0 0.0
      %536 = vmatpush1.msra.mxu0 0.0
      %537 = vmatprep.subr.mxu0 0.0
      %538 = vmatpush1.msra.mxu0 0.0
      %539 = vmatprep.subr.mxu0 0.0
      %540 = vmatpush1.msra.mxu0 0.0
      %541 = vmatprep.subr.mxu0 0.0
      %542 = vmatpush1.msra.mxu0 0.0
      %543 = vmatprep.subr.mxu0 0.0
      %544 = vmatpush1.msra.mxu0 0.0
      %545 = vmatprep.subr.mxu0 0.0
      %546 = vmatpush1.msra.mxu0 0.0
      %547 = vmatprep.subr.mxu0 0.0
      %548 = vmatpush1.msra.mxu0 0.0
      %549 = vmatprep.subr.mxu0 0.0
      %550 = vmatpush1.msra.mxu0 0.0
      %551 = vmatprep.subr.mxu0 0.0
      %552 = vmatpush1.msra.mxu0 0.0
      %553 = vmatprep.subr.mxu0 0.0
      %554 = vmatpush1.msra.mxu0 0.0
      %555 = vmatprep.subr.mxu0 0.0
      %556 = vmatpush1.msra.mxu0 0.0
      %557 = vmatprep.subr.mxu0 0.0
      %558 = vmatpush1.msra.mxu0 0.0
      %559 = vmatprep.subr.mxu0 0.0
      %560 = vmatpush1.msra.mxu0 0.0
      %561 = vmatprep.subr.mxu0 0.0
      %562 = vmatpush1.msra.mxu0 0.0
      %563 = vmatprep.subr.mxu0 0.0
      %564 = vmatpush1.msra.mxu0 0.0
      %565 = vmatprep.subr.mxu0 0.0
      %566 = vmatpush1.msra.mxu0 0.0
      %567 = vmatprep.subr.mxu0 0.0
      %568 = vmatpush1.msra.mxu0 0.0
      %569 = vmatprep.subr.mxu0 0.0
      %570 = vmatpush1.msra.mxu0 0.0
      %571 = vmatprep.subr.mxu0 0.0
      %572 = vmatpush1.msra.mxu0 0.0
      %573 = vmatprep.subr.mxu0 0.0
      %574 = vmatpush1.msra.mxu0 0.0
      %575 = vmatprep.subr.mxu0 0.0
      %576 = vmatpush1.msra.mxu0 0.0
      %577 = vmatprep.mubr.f32.mxu0 0.0
      %578 = vmatmul.mubr.f32.gmra.mrb[0].mxu0 %v509
      %v579 = vpop.f32.mrb[0].mxu0
      %v580 = vadd.f32 %v505, %v579
      %v581 = vpop.f32.mrb[0].mxu0
      %582 = vdwg.mxu0
      %v583 = vmax.f32 %v580, 0.0
      %v584 = vld [vmem:[%s3] sm:$0xff]
      %v585 = vld [vmem:[#allocation3] sm:$0xff]
      %587 = vrot.lane.b32.xlu0 %v583, 2
      %v588 = vpop.permute.xlu0 %587
      %v590 = vsel %vm485, %v585, %v588
      %592 = vrot.lane.b32.xlu0 %v585, 127
      %v593 = vpop.permute.xlu0 %592
      %595 = vrot.lane.b32.xlu0 %v583, 1
      %v596 = vpop.permute.xlu0 %595
      %v598 = vsel %vm494, %v593, %v596
      %v599 = vld [vmem:[%s4] sm:$0xff]
      %601 = vset.pattern.permute.xlu0 0
      %602 = vperm.xlu0 %601, %v599
      %v603 = vpop.permute.xlu0 %602
      %vm605 = vcmask 195584
      %v607 = vsel %vm605, %v584, 0
      %609 = vmatprep.subr.mxu0 0.0
      %610 = vmatpush1.msra.mxu0 %v590
      %611 = vmatprep.subr.mxu0 0.0
      %612 = vmatpush1.msra.mxu0 %v598
      %613 = vmatprep.subr.mxu0 0.0
      %614 = vmatpush1.msra.mxu0 %v583
      %615 = vmatprep.subr.mxu0 0.0
      %616 = vmatpush1.msra.mxu0 0.0
      %617 = vmatprep.subr.mxu0 0.0
      %618 = vmatpush1.msra.mxu0 0.0
      %619 = vmatprep.subr.mxu0 0.0
      %620 = vmatpush1.msra.mxu0 0.0
      %621 = vmatprep.subr.mxu0 0.0
      %622 = vmatpush1.msra.mxu0 0.0
      %623 = vmatprep.subr.mxu0 0.0
      %624 = vmatpush1.msra.mxu0 0.0
      %625 = vmatprep.subr.mxu0 0.0
      %626 = vmatpush1.msra.mxu0 0.0
      %627 = vmatprep.subr.mxu0 0.0
      %628 = vmatpush1.msra.mxu0 0.0
      %629 = vmatprep.subr.mxu0 0.0
      %630 = vmatpush1.msra.mxu0 0.0
      %631 = vmatprep.subr.mxu0 0.0
      %632 = vmatpush1.msra.mxu0 0.0
      %633 = vmatprep.subr.mxu0 0.0
      %634 = vmatpush1.msra.mxu0 0.0
      %635 = vmatprep.subr.mxu0 0.0
      %636 = vmatpush1.msra.mxu0 0.0
      %637 = vmatprep.subr.mxu0 0.0
      %638 = vmatpush1.msra.mxu0 0.0
      %639 = vmatprep.subr.mxu0 0.0
      %640 = vmatpush1.msra.mxu0 0.0
      %641 = vmatprep.subr.mxu0 0.0
      %642 = vmatpush1.msra.mxu0 0.0
      %643 = vmatprep.subr.mxu0 0.0
      %644 = vmatpush1.msra.mxu0 0.0
      %645 = vmatprep.subr.mxu0 0.0
      %646 = vmatpush1.msra.mxu0 0.0
      %647 = vmatprep.subr.mxu0 0.0
      %648 = vmatpush1.msra.mxu0 0.0
      %649 = vmatprep.subr.mxu0 0.0
      %650 = vmatpush1.msra.mxu0 0.0
      %651 = vmatprep.subr.mxu0 0.0
      %652 = vmatpush1.msra.mxu0 0.0
      %653 = vmatprep.subr.mxu0 0.0
      %654 = vmatpush1.msra.mxu0 0.0
      %655 = vmatprep.subr.mxu0 0.0
      %656 = vmatpush1.msra.mxu0 0.0
      %657 = vmatprep.subr.mxu0 0.0
      %658 = vmatpush1.msra.mxu0 0.0
      %659 = vmatprep.subr.mxu0 0.0
      %660 = vmatpush1.msra.mxu0 0.0
      %661 = vmatprep.subr.mxu0 0.0
      %662 = vmatpush1.msra.mxu0 0.0
      %663 = vmatprep.subr.mxu0 0.0
      %664 = vmatpush1.msra.mxu0 0.0
      %665 = vmatprep.subr.mxu0 0.0
      %666 = vmatpush1.msra.mxu0 0.0
      %667 = vmatprep.subr.mxu0 0.0
      %668 = vmatpush1.msra.mxu0 0.0
      %669 = vmatprep.subr.mxu0 0.0
      %670 = vmatpush1.msra.mxu0 0.0
      %671 = vmatprep.subr.mxu0 0.0
      %672 = vmatpush1.msra.mxu0 0.0
      %673 = vmatprep.mubr.f32.mxu0 0.0
      %674 = vmatmul.mubr.f32.gmra.mrb[0].mxu0 %v607
      %v675 = vpop.f32.mrb[0].mxu0
      %v676 = vadd.f32 %v603, %v675
      %v677 = vpop.f32.mrb[0].mxu0
      %678 = vdwg.mxu0
      %v679 = vmax.f32 %v676, 0.0
      %v680 = vld [vmem:[%s5] sm:$0xff]
      %v681 = vld [vmem:[%s6] sm:$0xff]
      %683 = vset.pattern.permute.xlu0 0
      %684 = vperm.xlu0 %683, %v681
      %v685 = vpop.permute.xlu0 %684
      %vm687 = vcmask 31744
      %v689 = vsel %vm687, %v680, 0
      %691 = vmatprep.subr.mxu0 0.0
      %692 = vmatpush1.msra.mxu0 %v511
      %693 = vmatprep.subr.mxu0 0.0
      %694 = vmatpush1.msra.mxu0 0.0
      %695 = vmatprep.subr.mxu0 0.0
      %696 = vmatpush1.msra.mxu0 0.0
      %697 = vmatprep.subr.mxu0 0.0
      %698 = vmatpush1.msra.mxu0 0.0
      %699 = vmatprep.subr.mxu0 0.0
      %700 = vmatpush1.msra.mxu0 0.0
      %701 = vmatprep.subr.mxu0 0.0
      %702 = vmatpush1.msra.mxu0 0.0
      %703 = vmatprep.subr.mxu0 0.0
      %704 = vmatpush1.msra.mxu0 0.0
      %705 = vmatprep.subr.mxu0 0.0
      %706 = vmatpush1.msra.mxu0 0.0
      %707 = vmatprep.subr.mxu0 0.0
      %708 = vmatpush1.msra.mxu0 0.0
      %709 = vmatprep.subr.mxu0 0.0
      %710 = vmatpush1.msra.mxu0 0.0
      %711 = vmatprep.subr.mxu0 0.0
      %712 = vmatpush1.msra.mxu0 0.0
      %713 = vmatprep.subr.mxu0 0.0
      %714 = vmatpush1.msra.mxu0 0.0
      %715 = vmatprep.subr.mxu0 0.0
      %716 = vmatpush1.msra.mxu0 0.0
      %717 = vmatprep.subr.mxu0 0.0
      %718 = vmatpush1.msra.mxu0 0.0
      %719 = vmatprep.subr.mxu0 0.0
      %720 = vmatpush1.msra.mxu0 0.0
      %721 = vmatprep.subr.mxu0 0.0
      %722 = vmatpush1.msra.mxu0 0.0
      %723 = vmatprep.subr.mxu0 0.0
      %724 = vmatpush1.msra.mxu0 0.0
      %725 = vmatprep.subr.mxu0 0.0
      %726 = vmatpush1.msra.mxu0 0.0
      %727 = vmatprep.subr.mxu0 0.0
      %728 = vmatpush1.msra.mxu0 0.0
      %729 = vmatprep.subr.mxu0 0.0
      %730 = vmatpush1.msra.mxu0 0.0
      %731 = vmatprep.subr.mxu0 0.0
      %732 = vmatpush1.msra.mxu0 0.0
      %733 = vmatprep.subr.mxu0 0.0
      %734 = vmatpush1.msra.mxu0 0.0
      %735 = vmatprep.subr.mxu0 0.0
      %736 = vmatpush1.msra.mxu0 0.0
      %737 = vmatprep.subr.mxu0 0.0
      %738 = vmatpush1.msra.mxu0 0.0
      %739 = vmatprep.subr.mxu0 0.0
      %740 = vmatpush1.msra.mxu0 0.0
      %741 = vmatprep.subr.mxu0 0.0
      %742 = vmatpush1.msra.mxu0 0.0
      %743 = vmatprep.subr.mxu0 0.0
      %744 = vmatpush1.msra.mxu0 0.0
      %745 = vmatprep.subr.mxu0 0.0
      %746 = vmatpush1.msra.mxu0 0.0
      %747 = vmatprep.subr.mxu0 0.0
      %748 = vmatpush1.msra.mxu0 0.0
      %749 = vmatprep.subr.mxu0 0.0
      %750 = vmatpush1.msra.mxu0 0.0
      %751 = vmatprep.subr.mxu0 0.0
      %752 = vmatpush1.msra.mxu0 0.0
      %753 = vmatprep.subr.mxu0 0.0
      %754 = vmatpush1.msra.mxu0 0.0
      %755 = vmatprep.mubr.f32.mxu0 0.0
      %756 = vmatmul.mubr.f32.gmra.mrb[0].mxu0 %v689
      %v757 = vpop.f32.mrb[0].mxu0
      %v758 = vadd.f32 %v685, %v757
      %v759 = vpop.f32.mrb[0].mxu0
      %760 = vdwg.mxu0
      %vm761 = vcmask 11264
      %762 = vst.msk [vmem:[#allocation2] sm:$0xf] %vm761, %v483
      %763 = vst.msk [vmem:[#allocation3] sm:$0xff] %vm485, %v588
      %v764 = vadd.f32 %v679, %v758
      %v765 = vmax.f32 %v764, 0.0
      %v766 = vld [vmem:[%s7] sm:$0xff]
      %v767 = vld [vmem:[#allocation4] sm:$0xff]
      %769 = vrot.lane.b32.xlu0 %v765, 4
      %v770 = vpop.permute.xlu0 %769
      %v772 = vsel %vm687, %v767, %v770
      %774 = vrot.lane.b32.xlu0 %v767, 126
      %v775 = vpop.permute.xlu0 %774
      %777 = vrot.lane.b32.xlu0 %v765, 2
      %v778 = vpop.permute.xlu0 %777
      %v780 = vsel %vm485, %v775, %v778
      %v781 = vld [vmem:[%s8] sm:$0xff]
      %783 = vset.pattern.permute.xlu0 0
      %784 = vperm.xlu0 %783, %v781
      %v785 = vpop.permute.xlu0 %784
      %v788 = vsel %vm605, %v766, 0
      %790 = vmatprep.subr.mxu0 0.0
      %791 = vmatpush1.msra.mxu0 %v772
      %792 = vmatprep.subr.mxu0 0.0
      %793 = vmatpush1.msra.mxu0 %v780
      %794 = vmatprep.subr.mxu0 0.0
      %795 = vmatpush1.msra.mxu0 %v765
      %796 = vmatprep.subr.mxu0 0.0
      %797 = vmatpush1.msra.mxu0 0.0
      %798 = vmatprep.subr.mxu0 0.0
      %799 = vmatpush1.msra.mxu0 0.0
      %800 = vmatprep.subr.mxu0 0.0
      %801 = vmatpush1.msra.mxu0 0.0
      %802 = vmatprep.subr.mxu0 0.0
      %803 = vmatpush1.msra.mxu0 0.0
      %804 = vmatprep.subr.mxu0 0.0
      %805 = vmatpush1.msra.mxu0 0.0
      %806 = vmatprep.subr.mxu0 0.0
      %807 = vmatpush1.msra.mxu0 0.0
      %808 = vmatprep.subr.mxu0 0.0
      %809 = vmatpush1.msra.mxu0 0.0
      %810 = vmatprep.subr.mxu0 0.0
      %811 = vmatpush1.msra.mxu0 0.0
      %812 = vmatprep.subr.mxu0 0.0
      %813 = vmatpush1.msra.mxu0 0.0
      %814 = vmatprep.subr.mxu0 0.0
      %815 = vmatpush1.msra.mxu0 0.0
      %816 = vmatprep.subr.mxu0 0.0
      %817 = vmatpush1.msra.mxu0 0.0
      %818 = vmatprep.subr.mxu0 0.0
      %819 = vmatpush1.msra.mxu0 0.0
      %820 = vmatprep.subr.mxu0 0.0
      %821 = vmatpush1.msra.mxu0 0.0
      %822 = vmatprep.subr.mxu0 0.0
      %823 = vmatpush1.msra.mxu0 0.0
      %824 = vmatprep.subr.mxu0 0.0
      %825 = vmatpush1.msra.mxu0 0.0
      %826 = vmatprep.subr.mxu0 0.0
      %827 = vmatpush1.msra.mxu0 0.0
      %828 = vmatprep.subr.mxu0 0.0
      %829 = vmatpush1.msra.mxu0 0.0
      %830 = vmatprep.subr.mxu0 0.0
      %831 = vmatpush1.msra.mxu0 0.0
      %832 = vmatprep.subr.mxu0 0.0
      %833 = vmatpush1.msra.mxu0 0.0
      %834 = vmatprep.subr.mxu0 0.0
      %835 = vmatpush1.msra.mxu0 0.0
      %836 = vmatprep.subr.mxu0 0.0
      %837 = vmatpush1.msra.mxu0 0.0
      %838 = vmatprep.subr.mxu0 0.0
      %839 = vmatpush1.msra.mxu0 0.0
      %840 = vmatprep.subr.mxu0 0.0
      %841 = vmatpush1.msra.mxu0 0.0
      %842 = vmatprep.subr.mxu0 0.0
      %843 = vmatpush1.msra.mxu0 0.0
      %844 = vmatprep.subr.mxu0 0.0
      %845 = vmatpush1.msra.mxu0 0.0
      %846 = vmatprep.subr.mxu0 0.0
      %847 = vmatpush1.msra.mxu0 0.0
      %848 = vmatprep.subr.mxu0 0.0
      %849 = vmatpush1.msra.mxu0 0.0
      %850 = vmatprep.subr.mxu0 0.0
      %851 = vmatpush1.msra.mxu0 0.0
      %852 = vmatprep.subr.mxu0 0.0
      %853 = vmatpush1.msra.mxu0 0.0
      %854 = vmatprep.mubr.f32.mxu0 0.0
      %855 = vmatmul.mubr.f32.gmra.mrb[0].mxu0 %v788
      %v856 = vpop.f32.mrb[0].mxu0
      %v857 = vadd.f32 %v785, %v856
      %v858 = vpop.f32.mrb[0].mxu0
      %859 = vdwg.mxu0
      %v860 = vmax.f32 %v857, 0.0
      %v861 = vld [vmem:[%s9] sm:$0xff]
      %v862 = vld [vmem:[#allocation5] sm:$0xff]
      %864 = vrot.lane.b32.xlu0 %v860, 4
      %v865 = vpop.permute.xlu0 %864
      %v867 = vsel %vm687, %v862, %v865
      %869 = vrot.lane.b32.xlu0 %v862, 126
      %v870 = vpop.permute.xlu0 %869
      %872 = vrot.lane.b32.xlu0 %v860, 2
      %v873 = vpop.permute.xlu0 %872
      %v875 = vsel %vm485, %v870, %v873
      %v876 = vld [vmem:[%s10] sm:$0xff]
      %878 = vset.pattern.permute.xlu0 0
      %879 = vperm.xlu0 %878, %v876
      %v880 = vpop.permute.xlu0 %879
      %v883 = vsel %vm605, %v861, 0
      %885 = vmatprep.subr.mxu0 0.0
      %886 = vmatpush1.msra.mxu0 %v867
      %887 = vmatprep.subr.mxu0 0.0
      %888 = vmatpush1.msra.mxu0 %v875
      %889 = vmatprep.subr.mxu0 0.0
      %890 = vmatpush1.msra.mxu0 %v860
      %891 = vmatprep.subr.mxu0 0.0
      %892 = vmatpush1.msra.mxu0 0.0
      %893 = vmatprep.subr.mxu0 0.0
      %894 = vmatpush1.msra.mxu0 0.0
      %895 = vmatprep.subr.mxu0 0.0
      %896 = vmatpush1.msra.mxu0 0.0
      %897 = vmatprep.subr.mxu0 0.0
      %898 = vmatpush1.msra.mxu0 0.0
      %899 = vmatprep.subr.mxu0 0.0
      %900 = vmatpush1.msra.mxu0 0.0
      %901 = vmatprep.subr.mxu0 0.0
      %902 = vmatpush1.msra.mxu0 0.0
      %903 = vmatprep.subr.mxu0 0.0
      %904 = vmatpush1.msra.mxu0 0.0
      %905 = vmatprep.subr.mxu0 0.0
      %906 = vmatpush1.msra.mxu0 0.0
      %907 = vmatprep.subr.mxu0 0.0
      %908 = vmatpush1.msra.mxu0 0.0
      %909 = vmatprep.subr.mxu0 0.0
      %910 = vmatpush1.msra.mxu0 0.0
      %911 = vmatprep.subr.mxu0 0.0
      %912 = vmatpush1.msra.mxu0 0.0
      %913 = vmatprep.subr.mxu0 0.0
      %914 = vmatpush1.msra.mxu0 0.0
      %915 = vmatprep.subr.mxu0 0.0
      %916 = vmatpush1.msra.mxu0 0.0
      %917 = vmatprep.subr.mxu0 0.0
      %918 = vmatpush1.msra.mxu0 0.0
      %919 = vmatprep.subr.mxu0 0.0
      %920 = vmatpush1.msra.mxu0 0.0
      %921 = vmatprep.subr.mxu0 0.0
      %922 = vmatpush1.msra.mxu0 0.0
      %923 = vmatprep.subr.mxu0 0.0
      %924 = vmatpush1.msra.mxu0 0.0
      %925 = vmatprep.subr.mxu0 0.0
      %926 = vmatpush1.msra.mxu0 0.0
      %927 = vmatprep.subr.mxu0 0.0
      %928 = vmatpush1.msra.mxu0 0.0
      %929 = vmatprep.subr.mxu0 0.0
      %930 = vmatpush1.msra.mxu0 0.0
      %931 = vmatprep.subr.mxu0 0.0
      %932 = vmatpush1.msra.mxu0 0.0
      %933 = vmatprep.subr.mxu0 0.0
      %934 = vmatpush1.msra.mxu0 0.0
      %935 = vmatprep.subr.mxu0 0.0
      %936 = vmatpush1.msra.mxu0 0.0
      %937 = vmatprep.subr.mxu0 0.0
      %938 = vmatpush1.msra.mxu0 0.0
      %939 = vmatprep.subr.mxu0 0.0
      %940 = vmatpush1.msra.mxu0 0.0
      %941 = vmatprep.subr.mxu0 0.0
      %942 = vmatpush1.msra.mxu0 0.0
      %943 = vmatprep.subr.mxu0 0.0
      %944 = vmatpush1.msra.mxu0 0.0
      %945 = vmatprep.subr.mxu0 0.0
      %946 = vmatpush1.msra.mxu0 0.0
      %947 = vmatprep.subr.mxu0 0.0
      %948 = vmatpush1.msra.mxu0 0.0
      %949 = vmatprep.mubr.f32.mxu0 0.0
      %950 = vmatmul.mubr.f32.gmra.mrb[0].mxu0 %v883
      %v951 = vpop.f32.mrb[0].mxu0
      %v952 = vadd.f32 %v880, %v951
      %v953 = vpop.f32.mrb[0].mxu0
      %954 = vdwg.mxu0
      %v955 = vmax.f32 %v952, 0.0
      %956 = vst.msk [vmem:[#allocation4] sm:$0xff] %vm687, %v770
      %957 = vst.msk [vmem:[#allocation5] sm:$0xff] %vm687, %v865
      %v958 = vadd.f32 %v955, %v765
      %v959 = vmax.f32 %v958, 0.0
      %v960 = vld [vmem:[%s11] sm:$0x1f]
      %v961 = vld [vmem:[%s12] sm:$0x1f]
      %963 = vset.pattern.permute.xlu0 0
      %964 = vperm.xlu0 %963, %v961
      %v965 = vpop.permute.xlu0 %964
      %vm967 = vcmask 64512
      %v969 = vsel %vm967, %v960, 0
      %971 = vmatprep.subr.mxu0 0.0
      %972 = vmatpush1.msra.mxu0 %v959
      %973 = vmatprep.subr.mxu0 0.0
      %974 = vmatpush1.msra.mxu0 0.0
      %975 = vmatprep.subr.mxu0 0.0
      %976 = vmatpush1.msra.mxu0 0.0
      %977 = vmatprep.subr.mxu0 0.0
      %978 = vmatpush1.msra.mxu0 0.0
      %979 = vmatprep.subr.mxu0 0.0
      %980 = vmatpush1.msra.mxu0 0.0
      %981 = vmatprep.subr.mxu0 0.0
      %982 = vmatpush1.msra.mxu0 0.0
      %983 = vmatprep.subr.mxu0 0.0
      %984 = vmatpush1.msra.mxu0 0.0
      %985 = vmatprep.subr.mxu0 0.0
      %986 = vmatpush1.msra.mxu0 0.0
      %987 = vmatprep.subr.mxu0 0.0
      %988 = vmatpush1.msra.mxu0 0.0
      %989 = vmatprep.subr.mxu0 0.0
      %990 = vmatpush1.msra.mxu0 0.0
      %991 = vmatprep.subr.mxu0 0.0
      %992 = vmatpush1.msra.mxu0 0.0
      %993 = vmatprep.subr.mxu0 0.0
      %994 = vmatpush1.msra.mxu0 0.0
      %995 = vmatprep.subr.mxu0 0.0
      %996 = vmatpush1.msra.mxu0 0.0
      %997 = vmatprep.subr.mxu0 0.0
      %998 = vmatpush1.msra.mxu0 0.0
      %999 = vmatprep.subr.mxu0 0.0
      %1000 = vmatpush1.msra.mxu0 0.0
      %1001 = vmatprep.subr.mxu0 0.0
      %1002 = vmatpush1.msra.mxu0 0.0
      %1003 = vmatprep.subr.mxu0 0.0
      %1004 = vmatpush1.msra.mxu0 0.0
      %1005 = vmatprep.subr.mxu0 0.0
      %1006 = vmatpush1.msra.mxu0 0.0
      %1007 = vmatprep.subr.mxu0 0.0
      %1008 = vmatpush1.msra.mxu0 0.0
      %1009 = vmatprep.subr.mxu0 0.0
      %1010 = vmatpush1.msra.mxu0 0.0
      %1011 = vmatprep.subr.mxu0 0.0
      %1012 = vmatpush1.msra.mxu0 0.0
      %1013 = vmatprep.subr.mxu0 0.0
      %1014 = vmatpush1.msra.mxu0 0.0
      %1015 = vmatprep.subr.mxu0 0.0
      %1016 = vmatpush1.msra.mxu0 0.0
      %1017 = vmatprep.subr.mxu0 0.0
      %1018 = vmatpush1.msra.mxu0 0.0
      %1019 = vmatprep.subr.mxu0 0.0
      %1020 = vmatpush1.msra.mxu0 0.0
      %1021 = vmatprep.subr.mxu0 0.0
      %1022 = vmatpush1.msra.mxu0 0.0
      %1023 = vmatprep.subr.mxu0 0.0
      %1024 = vmatpush1.msra.mxu0 0.0
      %1025 = vmatprep.subr.mxu0 0.0
      %1026 = vmatpush1.msra.mxu0 0.0
      %1027 = vmatprep.subr.mxu0 0.0
      %1028 = vmatpush1.msra.mxu0 0.0
      %1029 = vmatprep.subr.mxu0 0.0
      %1030 = vmatpush1.msra.mxu0 0.0
      %1031 = vmatprep.subr.mxu0 0.0
      %1032 = vmatpush1.msra.mxu0 0.0
      %1033 = vmatprep.subr.mxu0 0.0
      %1034 = vmatpush1.msra.mxu0 0.0
      %1035 = vmatprep.mubr.f32.mxu0 0.0
      %1036 = vmatmul.mubr.f32.gmra.mrb[0].mxu0 %v969
      %v1037 = vpop.f32.mrb[0].mxu0
      %v1038 = vadd.f32 %v965, %v1037
      %v1039 = vpop.f32.mrb[0].mxu0
      %1040 = vdwg.mxu0
      %1041 = vst [vmem:[%s466] sm:$0x1f] %v1038
      %p1042 = scmp.lt.s32.totalorder %s28, 1
      %s1043 = scalar_select %p1042, %s28, 1
      %p1044 = scmp.lt.s32.totalorder %s29, 0
      %s1045 = scalar_select %p1044, %s29, 0
      %s1046 = sadd.s32 %s1045, %s1043
      %s1047 = smul.addr %s1046, 8
      %s1048 = scalar_lea.vmem %s13, %s1047
      // Predicated region
      $region77: #{tpu_custom_call.1} parent=71 // pred_check
        %p1049 = pneg %p336
      $region78: #{tpu_custom_call.1} parent=71 // pred_check_branch
        %1051 = sbr.rel (%p1049) target = $region80
      $region79: #{tpu_custom_call.1} parent=71 // pred_region
        _
      $region80: #{tpu_custom_call.1} parent=71 // pred_fallthru
        _
    $region72: #{tpu_custom_call.1} parent=5 // pred_fallthru
      _
    %p1052 = scmp.le.s32.totalorder 2, %s19
    // Predicated region
    $region81: #{tpu_custom_call.1} parent=5 // pred_check
      %p1053 = pneg %p1052
    $region82: #{tpu_custom_call.1} parent=5 // pred_check_branch
      %1055 = sbr.rel (%p1053) target = $region84
    $region83: #{tpu_custom_call.1} parent=5 // pred_region
      %s1056 = ssub.s32 %s19, 2
      // Predicated region
      $region85: #{tpu_custom_call.1} parent=83 // pred_check
        %p1057 = pneg %p342
      $region86: #{tpu_custom_call.1} parent=83 // pred_check_branch
        %1059 = sbr.rel (%p1057) target = $region88
      $region87: #{tpu_custom_call.1} parent=83 // pred_region
        %p1060 = scmp.lt.s32.totalorder %s30, 1
        %s1061 = scalar_select %p1060, %s30, 1
        %p1062 = scmp.lt.s32.totalorder %s31, 0
        %s1063 = scalar_select %p1062, %s31, 0
        %s1064 = sadd.s32 %s1063, %s1061
        %s1065 = smul.addr %s1064, 8
        %s1066 = scalar_lea.vmem %s13, %s1065
      $region88: #{tpu_custom_call.1} parent=83 // pred_fallthru
        _
    $region84: #{tpu_custom_call.1} parent=5 // pred_fallthru
      _
  $region6: #{tpu_custom_call.1} parent=0 // loop_footer
    %s23 = sadd.s32 1, %s19
  $region7: #{tpu_custom_call.1} parent=0 // loop_footer_branch
    %18 = sbr.rel target = $region3
  $region8: #{tpu_custom_call.1} parent=0 // loop_exit
    _

</llo_original>
